<compile_context>
chip_gen: v7x
topology: tpu7x:2x2x1
jax: 0.10.0
libtpu: 0.0.40
codegen_flags: <defaults>
</compile_context>

<pallas_src>
import math
from functools import partial

import jax
import jax.numpy as jnp
from jax.experimental import pallas as pl
from jax.experimental.pallas import tpu as pltpu

# ----------------- model config (ModelArgs, small) -----------------
VOCAB = 64
D_MODEL = 32
N_HEADS = 4
D_HEAD = D_MODEL // N_HEADS
N_LAYERS = 2
MAX_SEQ = 16
NORM_EPS = 1e-5
ATTN_EPS = 1e-5
FFN_EPS = 1e-5
FFN_HIDDEN = 4 * D_MODEL
VOCAB_PAD = 128  # lane-dense logits store; sliced back to VOCAB in the wrapper

# ----------------- bf16 weight-slab row layout (static) -----------------
EMB_OFF = 0                              # tok_emb           [VOCAB, D]
OUTW_OFF = VOCAB                         # output head       [D, VOCAB_PAD]
LAYER0_OFF = OUTW_OFF + D_MODEL          # per-layer blocks start here
WQKV_OFF = 0                             # (rel) qkv+rot     [H*D, 5*Dh]
WO_OFF = N_HEADS * D_MODEL               # (rel) wo          [D, D]
W1_OFF = WO_OFF + D_MODEL                # (rel) w1          [D, FFN]
W2_OFF = W1_OFF + D_MODEL                # (rel) w2          [FFN, D]
LAYER_ROWS = W2_OFF + FFN_HIDDEN
W_ROWS = LAYER0_OFF + N_LAYERS * LAYER_ROWS      # 736 rows x 128 lanes bf16


def _t_offsets(M):
    """f32 table-slab row offsets, shared by packer and kernel."""
    HM = N_HEADS * M
    off = {}
    off["HM"] = HM
    off["mask"] = 0                       # [HM, HM]   causal block-diag bias
    off["cossin"] = HM                    # [HM, 0:16]=cos2  [HM,16:32]=sin2
    off["bm"] = 2 * HM                    # [HM, H*D]  head block-replication mask
    off["bqkv"] = 3 * HM                  # + l*HM     [HM, 5*Dh] extended qkv bias
    off["vec"] = (3 + N_LAYERS) * HM      # + l        attn_nw|ffn_nw|bo|b2
    off["b1"] = off["vec"] + N_LAYERS     # + l        b1 [1, FFN]
    off["fin"] = off["b1"] + N_LAYERS     # final RMSNorm weight
    off["outb"] = off["fin"] + 1          # output bias (padded to 128)
    off["rows"] = -(-(off["outb"] + 1) // 8) * 8
    return off


# ----------------- fused Pallas kernel -----------------
def _rmsnorm(x, w, eps):
    ms = jnp.mean(x * x, axis=-1, keepdims=True)
    return x * jax.lax.rsqrt(ms + eps) * w


def _fused_gpt_kernel(tok_ref, w_ref, t_ref, o_ref, *, M):
    D = D_MODEL
    Dh = D_HEAD
    H = N_HEADS
    HM = H * M
    off = _t_offsets(M)
    bf16 = jnp.bfloat16

    # ---- constant tables (f32 slab, static slices) ----
    mask = t_ref[0:HM, 0:HM]                                    # block-diag causal bias
    cos2 = t_ref[off["cossin"]:off["cossin"] + HM, 0:2 * Dh]    # q cols pre-scaled by 1/sqrt(Dh)
    sin2 = t_ref[off["cossin"]:off["cossin"] + HM, 2 * Dh:4 * Dh]
    bm = t_ref[off["bm"]:off["bm"] + HM, 0:H * D]               # head block-replication mask

    # ---- token embedding: one-hot matmul keeps the gather on the MXU ----
    tok = tok_ref[...]                                          # [M, 1] int32
    lane = jax.lax.broadcasted_iota(jnp.int32, (M, VOCAB), 1)
    onehot = jnp.where(lane == tok, 1.0, 0.0).astype(bf16)      # [M, VOCAB]
    emb = w_ref[EMB_OFF:EMB_OFF + VOCAB, 0:D]                   # bf16
    h = jnp.dot(onehot, emb, preferred_element_type=jnp.float32)  # [M, D] f32 residual

    for l in range(N_LAYERS):
        base = LAYER0_OFF + l * LAYER_ROWS
        vrow = off["vec"] + l
        attn_nw = t_ref[vrow:vrow + 1, 0:D]
        ffn_nw = t_ref[vrow:vrow + 1, D:2 * D]
        bo = t_ref[vrow:vrow + 1, 2 * D:3 * D]
        b2 = t_ref[vrow:vrow + 1, 3 * D:4 * D]
        b1row = off["b1"] + l
        b1 = t_ref[b1row:b1row + 1, 0:FFN_HIDDEN]
        bqkv = t_ref[off["bqkv"] + l * HM:off["bqkv"] + (l + 1) * HM, 0:5 * Dh]

        # ---- attention sub-block (pre-RMSNorm) ----
        xn = _rmsnorm(h, attn_nw, ATTN_EPS)                      # [M, D] f32
        # Head-major row expansion WITHOUT an activation transpose: tile xn to
        # [H*M, H*D], zero the off-diagonal head blocks, then one matmul against
        # the head-major-stacked (and RoPE-pre-rotated) QKV weight.
        xw = jnp.concatenate([xn] * H, axis=1)                   # [M, H*D]
        xn_blk = (jnp.concatenate([xw] * H, axis=0) * bm).astype(bf16)   # [HM, H*D]
        wqkv = w_ref[base + WQKV_OFF:base + WQKV_OFF + H * D, 0:5 * Dh]  # [H*D, 5*Dh] bf16
        qkv = jnp.dot(xn_blk, wqkv, preferred_element_type=jnp.float32) + bqkv  # [HM, 40]

        # RoPE (interleaved-pair / llama convention): rotated q/k columns were
        # folded into the projection weights, so no extra matmul here.
        qk = qkv[:, 0:2 * Dh] * cos2 + qkv[:, 3 * Dh:5 * Dh] * sin2      # [HM, 16]
        q = qk[:, 0:Dh].astype(bf16)           # already scaled by 1/sqrt(Dh)
        k = qk[:, Dh:2 * Dh].astype(bf16)
        v = qkv[:, 2 * Dh:3 * Dh].astype(bf16)

        # One masked score matmul + one softmax for ALL (batch, head) pairs.
        s = jax.lax.dot_general(q, k, (((1,), (1,)), ((), ())),
                                preferred_element_type=jnp.float32) + mask       # [HM, HM]
        mx = jnp.max(s, axis=-1, keepdims=True)
        p = jnp.exp(s - mx)
        p = p * pl.reciprocal(jnp.sum(p, axis=-1, keepdims=True), approx=True)
        attn_hm = jnp.dot(p.astype(bf16), v, preferred_element_type=jnp.float32)  # [HM, Dh]

        # head-major [H*M, Dh] -> [M, D]: 4 static sublane slices + lane concat
        attn_md = jnp.concatenate(
            [attn_hm[hh * M:(hh + 1) * M, :] for hh in range(H)], axis=1)         # [M, D]
        wo = w_ref[base + WO_OFF:base + WO_OFF + D, 0:D]
        attn_out = jnp.dot(attn_md.astype(bf16), wo,
                           preferred_element_type=jnp.float32) + bo
        h = h + attn_out                                         # dropout == identity (eval)

        # ---- feed-forward sub-block (pre-RMSNorm) ----
        hn = _rmsnorm(h, ffn_nw, FFN_EPS).astype(bf16)
        w1 = w_ref[base + W1_OFF:base + W1_OFF + D, 0:FFN_HIDDEN]
        ff = jnp.dot(hn, w1, preferred_element_type=jnp.float32) + b1
        # TODO(synk): PyTorch nn.GELU defaults to the exact erf form; tanh-approx used here.
        ff = jax.nn.gelu(ff)
        w2 = w_ref[base + W2_OFF:base + W2_OFF + FFN_HIDDEN, 0:D]
        ff = jnp.dot(ff.astype(bf16), w2, preferred_element_type=jnp.float32) + b2
        h = h + ff

    # ---- final RMSNorm + vocab head (lane-dense 128-wide store) ----
    hn = _rmsnorm(h, t_ref[off["fin"]:off["fin"] + 1, 0:D], NORM_EPS).astype(bf16)
    out_w = w_ref[OUTW_OFF:OUTW_OFF + D, :]
    out_b = t_ref[off["outb"]:off["outb"] + 1, :]
    o_ref[...] = jnp.dot(hn, out_w, preferred_element_type=jnp.float32) + out_b


# ----------------- one-time packing (outside the jitted forward) -----------------
def precompute_freqs(d_head, max_seq, theta=10000.0):
    inv = 1.0 / (theta ** (jnp.arange(0, d_head, 2, dtype=jnp.float32) / d_head))
    m = jnp.arange(max_seq, dtype=jnp.float32)
    freqs = jnp.outer(m, inv)                        # [max_seq, d_head//2]
    return jnp.cos(freqs), jnp.sin(freqs)


def _rot8():
    # (x @ rot)[2i] = -x[2i+1], (x @ rot)[2i+1] = x[2i]  (interleaved-pair rotation)
    return jnp.kron(jnp.eye(D_HEAD // 2, dtype=jnp.float32),
                    jnp.array([[0.0, 1.0], [-1.0, 0.0]], jnp.float32))


def pack_weight_slab(params):
    """All matmul weights as one lane-dense bf16 slab [W_ROWS, 128]."""
    rot = _rot8()
    W = jnp.zeros((W_ROWS, 128), jnp.float32)
    W = W.at[EMB_OFF:EMB_OFF + VOCAB, 0:D_MODEL].set(params["tok_emb"])
    W = W.at[OUTW_OFF:OUTW_OFF + D_MODEL, 0:VOCAB].set(params["out_w"])
    for l, lp in enumerate(params["layers"]):
        base = LAYER0_OFF + l * LAYER_ROWS
        blocks = []
        for hh in range(N_HEADS):
            sl = slice(hh * D_HEAD, (hh + 1) * D_HEAD)
            wq_h, wk_h, wv_h = lp["wq"][:, sl], lp["wk"][:, sl], lp["wv"][:, sl]
            blocks.append(jnp.concatenate(
                [wq_h, wk_h, wv_h, wq_h @ rot, wk_h @ rot], axis=1))       # [D, 5*Dh]
        w_ext = jnp.concatenate(blocks, axis=0)                            # [H*D, 5*Dh]
        W = W.at[base + WQKV_OFF:base + WQKV_OFF + N_HEADS * D_MODEL, 0:5 * D_HEAD].set(w_ext)
        W = W.at[base + WO_OFF:base + WO_OFF + D_MODEL, 0:D_MODEL].set(lp["wo"])
        W = W.at[base + W1_OFF:base + W1_OFF + D_MODEL, 0:FFN_HIDDEN].set(lp["w1"])
        W = W.at[base + W2_OFF:base + W2_OFF + FFN_HIDDEN, 0:D_MODEL].set(lp["w2"])
    return W.astype(jnp.bfloat16)


def pack_table_slab(params, B, S, start_pos, cos_tab, sin_tab):
    """All f32 constants (mask, RoPE tables, block mask, biases, norms) as one slab."""
    M = B * S
    off = _t_offsets(M)
    HM = off["HM"]
    assert HM <= 128 and N_HEADS * D_MODEL <= 128 and start_pos + S <= MAX_SEQ
    rot = _rot8()
    scale = 1.0 / math.sqrt(D_HEAD)
    T = jnp.zeros((off["rows"], 128), jnp.float32)

    # block-diagonal causal bias over rows/cols ordered (head, batch, pos)
    idx = jnp.arange(HM)
    hh = idx // M
    mm = idx % M
    bb = mm // S
    ss = mm % S
    allow = ((hh[:, None] == hh[None, :]) & (bb[:, None] == bb[None, :])
             & (ss[None, :] <= ss[:, None]))          # window-relative causal (no KV cache)
    T = T.at[0:HM, 0:HM].set(jnp.where(allow, 0.0, -1e30).astype(jnp.float32))

    # RoPE cos/sin (interleaved-pair), head-major rows; q columns carry 1/sqrt(Dh)
    cos = cos_tab[start_pos:start_pos + S]
    sin = sin_tab[start_pos:start_pos + S]
    cos_d = jnp.repeat(cos, 2, axis=-1)               # [S, Dh]
    sin_d = jnp.repeat(sin, 2, axis=-1)
    cos_hm = jnp.tile(cos_d, (N_HEADS * B, 1))        # [HM, Dh]
    sin_hm = jnp.tile(sin_d, (N_HEADS * B, 1))
    T = T.at[off["cossin"]:off["cossin"] + HM, 0:2 * D_HEAD].set(
        jnp.concatenate([cos_hm * scale, cos_hm], axis=1))
    T = T.at[off["cossin"]:off["cossin"] + HM, 2 * D_HEAD:4 * D_HEAD].set(
        jnp.concatenate([sin_hm * scale, sin_hm], axis=1))

    # head block-replication mask for the tile-based head-major expansion
    BM = jnp.kron(jnp.eye(N_HEADS, dtype=jnp.float32),
                  jnp.ones((M, D_MODEL), jnp.float32))          # [HM, H*D]
    T = T.at[off["bm"]:off["bm"] + HM, 0:N_HEADS * D_MODEL].set(BM)

    for l, lp in enumerate(params["layers"]):
        rows = []
        for hhh in range(N_HEADS):
            sl = slice(hhh * D_HEAD, (hhh + 1) * D_HEAD)
            bq_h, bk_h, bv_h = lp["bq"][sl], lp["bk"][sl], lp["bv"][sl]
            b_h = jnp.concatenate([bq_h, bk_h, bv_h, bq_h @ rot, bk_h @ rot])   # [40]
            rows.append(jnp.tile(b_h[None, :], (M, 1)))
        b_ext = jnp.concatenate(rows, axis=0)                                   # [HM, 40]
        T = T.at[off["bqkv"] + l * HM:off["bqkv"] + (l + 1) * HM, 0:5 * D_HEAD].set(b_ext)

        vrow = off["vec"] + l
        T = T.at[vrow, 0:D_MODEL].set(lp["attn_norm"])
        T = T.at[vrow, D_MODEL:2 * D_MODEL].set(lp["ffn_norm"])
        T = T.at[vrow, 2 * D_MODEL:3 * D_MODEL].set(lp["bo"])
        T = T.at[vrow, 3 * D_MODEL:4 * D_MODEL].set(lp["b2"])
        T = T.at[off["b1"] + l, 0:FFN_HIDDEN].set(lp["b1"])

    T = T.at[off["fin"], 0:D_MODEL].set(params["norm_w"])
    T = T.at[off["outb"], 0:VOCAB].set(params["out_b"])
    return T


# ----------------- jitted per-call forward (tokens + 2 slabs -> logits) -----------------
@jax.jit
def tiny_gpt_forward(wslab, tslab, tokens):
    B, S = tokens.shape
    M = B * S
    tok2d = tokens.reshape(M, 1).astype(jnp.int32)
    kernel = partial(_fused_gpt_kernel, M=M)
    logits_pad = pl.pallas_call(
        kernel,
        out_shape=jax.ShapeDtypeStruct((M, VOCAB_PAD), jnp.float32),
        compiler_params=pltpu.CompilerParams(vmem_limit_bytes=16 * 1024 * 1024),
    )(tok2d, wslab, tslab)
    return logits_pad[:, :VOCAB].reshape(B, S, VOCAB)


# ----------------- deterministic parameter init -----------------
def init_params(key):
    keys = jax.random.split(key, 4 + N_LAYERS)

    def lin(k, fan_in, fan_out):
        k1, k2 = jax.random.split(k)
        bound = 1.0 / math.sqrt(fan_in)
        w = jax.random.uniform(k1, (fan_in, fan_out), jnp.float32, -bound, bound)
        b = jax.random.uniform(k2, (fan_out,), jnp.float32, -bound, bound)
        return w, b

    params = {
        "tok_emb": jax.random.normal(keys[0], (VOCAB, D_MODEL), jnp.float32),
        "norm_w": jnp.ones((D_MODEL,), jnp.float32),
    }
    params["out_w"], params["out_b"] = lin(keys[1], D_MODEL, VOCAB)
    layers = []
    for i in range(N_LAYERS):
        lk = jax.random.split(keys[4 + i], 6)
        wq, bq = lin(lk[0], D_MODEL, D_MODEL)
        wk, bk = lin(lk[1], D_MODEL, D_MODEL)
        wv, bv = lin(lk[2], D_MODEL, D_MODEL)
        wo, bo = lin(lk[3], D_MODEL, D_MODEL)
        w1, b1 = lin(lk[4], D_MODEL, FFN_HIDDEN)
        w2, b2 = lin(lk[5], FFN_HIDDEN, D_MODEL)
        layers.append(dict(
            attn_norm=jnp.ones((D_MODEL,), jnp.float32),
            ffn_norm=jnp.ones((D_MODEL,), jnp.float32),
            wq=wq, bq=bq, wk=wk, bk=bk, wv=wv, bv=bv, wo=wo, bo=bo,
            w1=w1, b1=b1, w2=w2, b2=b2,
        ))
    params["layers"] = layers
    return params


if __name__ == "__main__":
    root = jax.random.PRNGKey(0)
    pkey, tkey = jax.random.split(root)
    params = init_params(pkey)
    cos_tab, sin_tab = precompute_freqs(D_HEAD, MAX_SEQ)

    B, S = 2, 8
    start_pos = 0

    # one-time packing (outside the jitted forward): 2 slabs, built once
    wslab = jax.device_put(pack_weight_slab(params))
    tslab = jax.device_put(pack_table_slab(params, B, S, start_pos, cos_tab, sin_tab))

    tokens = jax.random.randint(tkey, (B, S), 0, VOCAB, dtype=jnp.int32)

    out = tiny_gpt_forward(wslab, tslab, tokens)
    out = jax.block_until_ready(out)
    assert out.shape == (B, S, VOCAB) and out.dtype == jnp.float32
    assert bool(jnp.all(jnp.isfinite(out)))
    print("KERNEL_OK")
</pallas_src>

<mosaic_0001>
module attributes {stable_mosaic.version = 11 : i64} {
  func.func @_fused_gpt_kernel(%arg0: memref<16x1xi32, #tpu.memory_space<vmem>>, %arg1: memref<736x128xbf16, #tpu.memory_space<vmem>>, %arg2: memref<328x128xf32, #tpu.memory_space<vmem>>, %arg3: memref<16x128xf32, #tpu.memory_space<vmem>>) attributes {dimension_semantics = [], scalar_prefetch = 0 : i64, scratch_operands = 0 : i64, tpu.core_type = #tpu.core_type<tc>} {
    %c0 = arith.constant 0 : index
    %c0_0 = arith.constant 0 : index
    %0 = vector.load %arg2[%c0, %c0_0] : memref<328x128xf32, #tpu.memory_space<vmem>>, vector<64x64xf32>
    %c64 = arith.constant 64 : index
    %c0_1 = arith.constant 0 : index
    %1 = vector.load %arg2[%c64, %c0_1] : memref<328x128xf32, #tpu.memory_space<vmem>>, vector<64x16xf32>
    %c64_2 = arith.constant 64 : index
    %c16 = arith.constant 16 : index
    %2 = vector.load %arg2[%c64_2, %c16] : memref<328x128xf32, #tpu.memory_space<vmem>>, vector<64x16xf32>
    %c128 = arith.constant 128 : index
    %c0_3 = arith.constant 0 : index
    %3 = vector.load %arg2[%c128, %c0_3] : memref<328x128xf32, #tpu.memory_space<vmem>>, vector<64x128xf32>
    %c0_4 = arith.constant 0 : index
    %c0_5 = arith.constant 0 : index
    %4 = vector.load %arg0[%c0_4, %c0_5] : memref<16x1xi32, #tpu.memory_space<vmem>>, vector<16x1xi32>
    %5 = tpu.iota {dimensions = array<i32: 1>} : vector<16x64xi32>
    %6 = vector.broadcast %4 : vector<16x1xi32> to vector<16x64xi32>
    %7 = arith.cmpi eq, %5, %6 : vector<16x64xi32>
    %cst = arith.constant 1.000000e+00 : f32
    %cst_6 = arith.constant 0.000000e+00 : f32
    %8 = vector.broadcast %cst : f32 to vector<16x64xf32>
    %9 = vector.broadcast %cst_6 : f32 to vector<16x64xf32>
    %10 = arith.select %7, %8, %9 : vector<16x64xi1>, vector<16x64xf32>
    %11 = arith.truncf %10 : vector<16x64xf32> to vector<16x64xbf16>
    %c0_7 = arith.constant 0 : index
    %c0_8 = arith.constant 0 : index
    %12 = vector.load %arg1[%c0_7, %c0_8] : memref<736x128xbf16, #tpu.memory_space<vmem>>, vector<64x32xbf16>
    %cst_9 = arith.constant dense<0.000000e+00> : vector<16x32xf32>
    %13 = tpu.matmul %11, %12, %cst_9 {dimension_numbers = #tpu.dot_dimension_numbers<[1], [0], [0], [1], [0, 0, 1, 1], [], []>} : vector<16x64xbf16>, vector<64x32xbf16>, vector<16x32xf32> -> vector<16x32xf32>
    %c320 = arith.constant 320 : index
    %c0_10 = arith.constant 0 : index
    %14 = vector.load %arg2[%c320, %c0_10] : memref<328x128xf32, #tpu.memory_space<vmem>>, vector<1x32xf32>
    %c320_11 = arith.constant 320 : index
    %c32 = arith.constant 32 : index
    %15 = vector.load %arg2[%c320_11, %c32] : memref<328x128xf32, #tpu.memory_space<vmem>>, vector<1x32xf32>
    %c320_12 = arith.constant 320 : index
    %c64_13 = arith.constant 64 : index
    %16 = vector.load %arg2[%c320_12, %c64_13] : memref<328x128xf32, #tpu.memory_space<vmem>>, vector<1x32xf32>
    %c320_14 = arith.constant 320 : index
    %c96 = arith.constant 96 : index
    %17 = vector.load %arg2[%c320_14, %c96] : memref<328x128xf32, #tpu.memory_space<vmem>>, vector<1x32xf32>
    %c322 = arith.constant 322 : index
    %c0_15 = arith.constant 0 : index
    %18 = vector.load %arg2[%c322, %c0_15] : memref<328x128xf32, #tpu.memory_space<vmem>>, vector<1x128xf32>
    %c192 = arith.constant 192 : index
    %c0_16 = arith.constant 0 : index
    %19 = vector.load %arg2[%c192, %c0_16] : memref<328x128xf32, #tpu.memory_space<vmem>>, vector<64x40xf32>
    %20 = arith.mulf %13, %13 : vector<16x32xf32>
    %cst_17 = arith.constant dense<0.000000e+00> : vector<16xf32>
    %21 = vector.multi_reduction <add>, %20, %cst_17 [1] : vector<16x32xf32> to vector<16xf32>
    %22 = vector.shape_cast %21 : vector<16xf32> to vector<16x1xf32>
    %cst_18 = arith.constant 3.200000e+01 : f32
    %23 = vector.broadcast %cst_18 : f32 to vector<16x1xf32>
    %24 = arith.divf %22, %23 : vector<16x1xf32>
    %cst_19 = arith.constant 9.99999974E-6 : f32
    %25 = vector.broadcast %cst_19 : f32 to vector<16x1xf32>
    %26 = arith.addf %24, %25 : vector<16x1xf32>
    %27 = math.rsqrt %26 : vector<16x1xf32>
    %28 = vector.broadcast %27 : vector<16x1xf32> to vector<16x32xf32>
    %29 = arith.mulf %13, %28 : vector<16x32xf32>
    %30 = vector.broadcast %14 : vector<1x32xf32> to vector<16x32xf32>
    %31 = arith.mulf %29, %30 : vector<16x32xf32>
    %32 = tpu.concatenate %31, %31, %31, %31 in 1 : vector<16x32xf32>, vector<16x32xf32>, vector<16x32xf32>, vector<16x32xf32> -> vector<16x128xf32>
    %33 = tpu.concatenate %32, %32, %32, %32 in 0 : vector<16x128xf32>, vector<16x128xf32>, vector<16x128xf32>, vector<16x128xf32> -> vector<64x128xf32>
    %34 = arith.mulf %33, %3 : vector<64x128xf32>
    %35 = arith.truncf %34 : vector<64x128xf32> to vector<64x128xbf16>
    %c96_20 = arith.constant 96 : index
    %c0_21 = arith.constant 0 : index
    %36 = vector.load %arg1[%c96_20, %c0_21] : memref<736x128xbf16, #tpu.memory_space<vmem>>, vector<128x40xbf16>
    %cst_22 = arith.constant dense<0.000000e+00> : vector<64x40xf32>
    %37 = tpu.matmul %35, %36, %cst_22 {dimension_numbers = #tpu.dot_dimension_numbers<[1], [0], [0], [1], [0, 0, 1, 1], [], []>} : vector<64x128xbf16>, vector<128x40xbf16>, vector<64x40xf32> -> vector<64x40xf32>
    %38 = arith.addf %37, %19 : vector<64x40xf32>
    %39 = vector.extract_strided_slice %38 {offsets = [0, 0], sizes = [64, 16], strides = [1, 1]} : vector<64x40xf32> to vector<64x16xf32>
    %40 = arith.mulf %39, %1 : vector<64x16xf32>
    %41 = vector.extract_strided_slice %38 {offsets = [0, 24], sizes = [64, 16], strides = [1, 1]} : vector<64x40xf32> to vector<64x16xf32>
    %42 = arith.mulf %41, %2 : vector<64x16xf32>
    %43 = arith.addf %40, %42 : vector<64x16xf32>
    %44 = vector.extract_strided_slice %43 {offsets = [0, 0], sizes = [64, 8], strides = [1, 1]} : vector<64x16xf32> to vector<64x8xf32>
    %45 = arith.truncf %44 : vector<64x8xf32> to vector<64x8xbf16>
    %46 = vector.extract_strided_slice %43 {offsets = [0, 8], sizes = [64, 8], strides = [1, 1]} : vector<64x16xf32> to vector<64x8xf32>
    %47 = arith.truncf %46 : vector<64x8xf32> to vector<64x8xbf16>
    %48 = vector.extract_strided_slice %38 {offsets = [0, 16], sizes = [64, 8], strides = [1, 1]} : vector<64x40xf32> to vector<64x8xf32>
    %49 = arith.truncf %48 : vector<64x8xf32> to vector<64x8xbf16>
    %cst_23 = arith.constant dense<0.000000e+00> : vector<64x64xf32>
    %50 = tpu.matmul %45, %47, %cst_23 {dimension_numbers = #tpu.dot_dimension_numbers<[1], [1], [0], [0], [0, 0, 1, 0], [], []>} : vector<64x8xbf16>, vector<64x8xbf16>, vector<64x64xf32> -> vector<64x64xf32>
    %51 = arith.addf %50, %0 : vector<64x64xf32>
    %cst_24 = arith.constant dense<0xFF800000> : vector<64xf32>
    %52 = vector.multi_reduction <maximumf>, %51, %cst_24 [1] : vector<64x64xf32> to vector<64xf32>
    %53 = vector.shape_cast %52 : vector<64xf32> to vector<64x1xf32>
    %54 = vector.broadcast %53 : vector<64x1xf32> to vector<64x64xf32>
    %55 = arith.subf %51, %54 : vector<64x64xf32>
    %56 = math.exp %55 : vector<64x64xf32>
    %cst_25 = arith.constant dense<0.000000e+00> : vector<64xf32>
    %57 = vector.multi_reduction <add>, %56, %cst_25 [1] : vector<64x64xf32> to vector<64xf32>
    %58 = vector.shape_cast %57 : vector<64xf32> to vector<64x1xf32>
    %59 = tpu.reciprocal %58 {approx = true} : vector<64x1xf32> -> vector<64x1xf32>
    %60 = vector.broadcast %59 : vector<64x1xf32> to vector<64x64xf32>
    %61 = arith.mulf %56, %60 : vector<64x64xf32>
    %62 = arith.truncf %61 : vector<64x64xf32> to vector<64x64xbf16>
    %cst_26 = arith.constant dense<0.000000e+00> : vector<64x8xf32>
    %63 = tpu.matmul %62, %49, %cst_26 {dimension_numbers = #tpu.dot_dimension_numbers<[1], [0], [0], [1], [0, 0, 1, 1], [], []>} : vector<64x64xbf16>, vector<64x8xbf16>, vector<64x8xf32> -> vector<64x8xf32>
    %64 = vector.extract_strided_slice %63 {offsets = [0, 0], sizes = [16, 8], strides = [1, 1]} : vector<64x8xf32> to vector<16x8xf32>
    %65 = vector.extract_strided_slice %63 {offsets = [16, 0], sizes = [16, 8], strides = [1, 1]} : vector<64x8xf32> to vector<16x8xf32>
    %66 = vector.extract_strided_slice %63 {offsets = [32, 0], sizes = [16, 8], strides = [1, 1]} : vector<64x8xf32> to vector<16x8xf32>
    %67 = vector.extract_strided_slice %63 {offsets = [48, 0], sizes = [16, 8], strides = [1, 1]} : vector<64x8xf32> to vector<16x8xf32>
    %68 = tpu.concatenate %64, %65, %66, %67 in 1 : vector<16x8xf32>, vector<16x8xf32>, vector<16x8xf32>, vector<16x8xf32> -> vector<16x32xf32>
    %c224 = arith.constant 224 : index
    %c0_27 = arith.constant 0 : index
    %69 = vector.load %arg1[%c224, %c0_27] : memref<736x128xbf16, #tpu.memory_space<vmem>>, vector<32x32xbf16>
    %70 = arith.truncf %68 : vector<16x32xf32> to vector<16x32xbf16>
    %cst_28 = arith.constant dense<0.000000e+00> : vector<16x32xf32>
    %71 = tpu.matmul %70, %69, %cst_28 {dimension_numbers = #tpu.dot_dimension_numbers<[1], [0], [0], [1], [0, 0, 1, 1], [], []>} : vector<16x32xbf16>, vector<32x32xbf16>, vector<16x32xf32> -> vector<16x32xf32>
    %72 = vector.broadcast %16 : vector<1x32xf32> to vector<16x32xf32>
    %73 = arith.addf %71, %72 : vector<16x32xf32>
    %74 = arith.addf %13, %73 : vector<16x32xf32>
    %75 = arith.mulf %74, %74 : vector<16x32xf32>
    %cst_29 = arith.constant dense<0.000000e+00> : vector<16xf32>
    %76 = vector.multi_reduction <add>, %75, %cst_29 [1] : vector<16x32xf32> to vector<16xf32>
    %77 = vector.shape_cast %76 : vector<16xf32> to vector<16x1xf32>
    %cst_30 = arith.constant 3.200000e+01 : f32
    %78 = vector.broadcast %cst_30 : f32 to vector<16x1xf32>
    %79 = arith.divf %77, %78 : vector<16x1xf32>
    %cst_31 = arith.constant 9.99999974E-6 : f32
    %80 = vector.broadcast %cst_31 : f32 to vector<16x1xf32>
    %81 = arith.addf %79, %80 : vector<16x1xf32>
    %82 = math.rsqrt %81 : vector<16x1xf32>
    %83 = vector.broadcast %82 : vector<16x1xf32> to vector<16x32xf32>
    %84 = arith.mulf %74, %83 : vector<16x32xf32>
    %85 = vector.broadcast %15 : vector<1x32xf32> to vector<16x32xf32>
    %86 = arith.mulf %84, %85 : vector<16x32xf32>
    %87 = arith.truncf %86 : vector<16x32xf32> to vector<16x32xbf16>
    %c256 = arith.constant 256 : index
    %c0_32 = arith.constant 0 : index
    %88 = vector.load %arg1[%c256, %c0_32] : memref<736x128xbf16, #tpu.memory_space<vmem>>, vector<32x128xbf16>
    %cst_33 = arith.constant dense<0.000000e+00> : vector<16x128xf32>
    %89 = tpu.matmul %87, %88, %cst_33 {dimension_numbers = #tpu.dot_dimension_numbers<[1], [0], [0], [1], [0, 0, 1, 1], [], []>} : vector<16x32xbf16>, vector<32x128xbf16>, vector<16x128xf32> -> vector<16x128xf32>
    %90 = vector.broadcast %18 : vector<1x128xf32> to vector<16x128xf32>
    %91 = arith.addf %89, %90 : vector<16x128xf32>
    %92 = arith.mulf %91, %91 : vector<16x128xf32>
    %93 = arith.mulf %91, %92 : vector<16x128xf32>
    %cst_34 = arith.constant 4.471500e-02 : f32
    %94 = vector.broadcast %cst_34 : f32 to vector<16x128xf32>
    %95 = arith.mulf %94, %93 : vector<16x128xf32>
    %96 = arith.addf %91, %95 : vector<16x128xf32>
    %cst_35 = arith.constant 0.797884583 : f32
    %97 = vector.broadcast %cst_35 : f32 to vector<16x128xf32>
    %98 = arith.mulf %97, %96 : vector<16x128xf32>
    %99 = math.tanh %98 : vector<16x128xf32>
    %cst_36 = arith.constant 1.000000e+00 : f32
    %100 = vector.broadcast %cst_36 : f32 to vector<16x128xf32>
    %101 = arith.addf %100, %99 : vector<16x128xf32>
    %cst_37 = arith.constant 5.000000e-01 : f32
    %102 = vector.broadcast %cst_37 : f32 to vector<16x128xf32>
    %103 = arith.mulf %102, %101 : vector<16x128xf32>
    %104 = arith.mulf %91, %103 : vector<16x128xf32>
    %c288 = arith.constant 288 : index
    %c0_38 = arith.constant 0 : index
    %105 = vector.load %arg1[%c288, %c0_38] : memref<736x128xbf16, #tpu.memory_space<vmem>>, vector<128x32xbf16>
    %106 = arith.truncf %104 : vector<16x128xf32> to vector<16x128xbf16>
    %cst_39 = arith.constant dense<0.000000e+00> : vector<16x32xf32>
    %107 = tpu.matmul %106, %105, %cst_39 {dimension_numbers = #tpu.dot_dimension_numbers<[1], [0], [0], [1], [0, 0, 1, 1], [], []>} : vector<16x128xbf16>, vector<128x32xbf16>, vector<16x32xf32> -> vector<16x32xf32>
    %108 = vector.broadcast %17 : vector<1x32xf32> to vector<16x32xf32>
    %109 = arith.addf %107, %108 : vector<16x32xf32>
    %110 = arith.addf %74, %109 : vector<16x32xf32>
    %c321 = arith.constant 321 : index
    %c0_40 = arith.constant 0 : index
    %111 = vector.load %arg2[%c321, %c0_40] : memref<328x128xf32, #tpu.memory_space<vmem>>, vector<1x32xf32>
    %c321_41 = arith.constant 321 : index
    %c32_42 = arith.constant 32 : index
    %112 = vector.load %arg2[%c321_41, %c32_42] : memref<328x128xf32, #tpu.memory_space<vmem>>, vector<1x32xf32>
    %c321_43 = arith.constant 321 : index
    %c64_44 = arith.constant 64 : index
    %113 = vector.load %arg2[%c321_43, %c64_44] : memref<328x128xf32, #tpu.memory_space<vmem>>, vector<1x32xf32>
    %c321_45 = arith.constant 321 : index
    %c96_46 = arith.constant 96 : index
    %114 = vector.load %arg2[%c321_45, %c96_46] : memref<328x128xf32, #tpu.memory_space<vmem>>, vector<1x32xf32>
    %c323 = arith.constant 323 : index
    %c0_47 = arith.constant 0 : index
    %115 = vector.load %arg2[%c323, %c0_47] : memref<328x128xf32, #tpu.memory_space<vmem>>, vector<1x128xf32>
    %c256_48 = arith.constant 256 : index
    %c0_49 = arith.constant 0 : index
    %116 = vector.load %arg2[%c256_48, %c0_49] : memref<328x128xf32, #tpu.memory_space<vmem>>, vector<64x40xf32>
    %117 = arith.mulf %110, %110 : vector<16x32xf32>
    %cst_50 = arith.constant dense<0.000000e+00> : vector<16xf32>
    %118 = vector.multi_reduction <add>, %117, %cst_50 [1] : vector<16x32xf32> to vector<16xf32>
    %119 = vector.shape_cast %118 : vector<16xf32> to vector<16x1xf32>
    %cst_51 = arith.constant 3.200000e+01 : f32
    %120 = vector.broadcast %cst_51 : f32 to vector<16x1xf32>
    %121 = arith.divf %119, %120 : vector<16x1xf32>
    %cst_52 = arith.constant 9.99999974E-6 : f32
    %122 = vector.broadcast %cst_52 : f32 to vector<16x1xf32>
    %123 = arith.addf %121, %122 : vector<16x1xf32>
    %124 = math.rsqrt %123 : vector<16x1xf32>
    %125 = vector.broadcast %124 : vector<16x1xf32> to vector<16x32xf32>
    %126 = arith.mulf %110, %125 : vector<16x32xf32>
    %127 = vector.broadcast %111 : vector<1x32xf32> to vector<16x32xf32>
    %128 = arith.mulf %126, %127 : vector<16x32xf32>
    %129 = tpu.concatenate %128, %128, %128, %128 in 1 : vector<16x32xf32>, vector<16x32xf32>, vector<16x32xf32>, vector<16x32xf32> -> vector<16x128xf32>
    %130 = tpu.concatenate %129, %129, %129, %129 in 0 : vector<16x128xf32>, vector<16x128xf32>, vector<16x128xf32>, vector<16x128xf32> -> vector<64x128xf32>
    %131 = arith.mulf %130, %3 : vector<64x128xf32>
    %132 = arith.truncf %131 : vector<64x128xf32> to vector<64x128xbf16>
    %c416 = arith.constant 416 : index
    %c0_53 = arith.constant 0 : index
    %133 = vector.load %arg1[%c416, %c0_53] : memref<736x128xbf16, #tpu.memory_space<vmem>>, vector<128x40xbf16>
    %cst_54 = arith.constant dense<0.000000e+00> : vector<64x40xf32>
    %134 = tpu.matmul %132, %133, %cst_54 {dimension_numbers = #tpu.dot_dimension_numbers<[1], [0], [0], [1], [0, 0, 1, 1], [], []>} : vector<64x128xbf16>, vector<128x40xbf16>, vector<64x40xf32> -> vector<64x40xf32>
    %135 = arith.addf %134, %116 : vector<64x40xf32>
    %136 = vector.extract_strided_slice %135 {offsets = [0, 0], sizes = [64, 16], strides = [1, 1]} : vector<64x40xf32> to vector<64x16xf32>
    %137 = arith.mulf %136, %1 : vector<64x16xf32>
    %138 = vector.extract_strided_slice %135 {offsets = [0, 24], sizes = [64, 16], strides = [1, 1]} : vector<64x40xf32> to vector<64x16xf32>
    %139 = arith.mulf %138, %2 : vector<64x16xf32>
    %140 = arith.addf %137, %139 : vector<64x16xf32>
    %141 = vector.extract_strided_slice %140 {offsets = [0, 0], sizes = [64, 8], strides = [1, 1]} : vector<64x16xf32> to vector<64x8xf32>
    %142 = arith.truncf %141 : vector<64x8xf32> to vector<64x8xbf16>
    %143 = vector.extract_strided_slice %140 {offsets = [0, 8], sizes = [64, 8], strides = [1, 1]} : vector<64x16xf32> to vector<64x8xf32>
    %144 = arith.truncf %143 : vector<64x8xf32> to vector<64x8xbf16>
    %145 = vector.extract_strided_slice %135 {offsets = [0, 16], sizes = [64, 8], strides = [1, 1]} : vector<64x40xf32> to vector<64x8xf32>
    %146 = arith.truncf %145 : vector<64x8xf32> to vector<64x8xbf16>
    %cst_55 = arith.constant dense<0.000000e+00> : vector<64x64xf32>
    %147 = tpu.matmul %142, %144, %cst_55 {dimension_numbers = #tpu.dot_dimension_numbers<[1], [1], [0], [0], [0, 0, 1, 0], [], []>} : vector<64x8xbf16>, vector<64x8xbf16>, vector<64x64xf32> -> vector<64x64xf32>
    %148 = arith.addf %147, %0 : vector<64x64xf32>
    %cst_56 = arith.constant dense<0xFF800000> : vector<64xf32>
    %149 = vector.multi_reduction <maximumf>, %148, %cst_56 [1] : vector<64x64xf32> to vector<64xf32>
    %150 = vector.shape_cast %149 : vector<64xf32> to vector<64x1xf32>
    %151 = vector.broadcast %150 : vector<64x1xf32> to vector<64x64xf32>
    %152 = arith.subf %148, %151 : vector<64x64xf32>
    %153 = math.exp %152 : vector<64x64xf32>
    %cst_57 = arith.constant dense<0.000000e+00> : vector<64xf32>
    %154 = vector.multi_reduction <add>, %153, %cst_57 [1] : vector<64x64xf32> to vector<64xf32>
    %155 = vector.shape_cast %154 : vector<64xf32> to vector<64x1xf32>
    %156 = tpu.reciprocal %155 {approx = true} : vector<64x1xf32> -> vector<64x1xf32>
    %157 = vector.broadcast %156 : vector<64x1xf32> to vector<64x64xf32>
    %158 = arith.mulf %153, %157 : vector<64x64xf32>
    %159 = arith.truncf %158 : vector<64x64xf32> to vector<64x64xbf16>
    %cst_58 = arith.constant dense<0.000000e+00> : vector<64x8xf32>
    %160 = tpu.matmul %159, %146, %cst_58 {dimension_numbers = #tpu.dot_dimension_numbers<[1], [0], [0], [1], [0, 0, 1, 1], [], []>} : vector<64x64xbf16>, vector<64x8xbf16>, vector<64x8xf32> -> vector<64x8xf32>
    %161 = vector.extract_strided_slice %160 {offsets = [0, 0], sizes = [16, 8], strides = [1, 1]} : vector<64x8xf32> to vector<16x8xf32>
    %162 = vector.extract_strided_slice %160 {offsets = [16, 0], sizes = [16, 8], strides = [1, 1]} : vector<64x8xf32> to vector<16x8xf32>
    %163 = vector.extract_strided_slice %160 {offsets = [32, 0], sizes = [16, 8], strides = [1, 1]} : vector<64x8xf32> to vector<16x8xf32>
    %164 = vector.extract_strided_slice %160 {offsets = [48, 0], sizes = [16, 8], strides = [1, 1]} : vector<64x8xf32> to vector<16x8xf32>
    %165 = tpu.concatenate %161, %162, %163, %164 in 1 : vector<16x8xf32>, vector<16x8xf32>, vector<16x8xf32>, vector<16x8xf32> -> vector<16x32xf32>
    %c544 = arith.constant 544 : index
    %c0_59 = arith.constant 0 : index
    %166 = vector.load %arg1[%c544, %c0_59] : memref<736x128xbf16, #tpu.memory_space<vmem>>, vector<32x32xbf16>
    %167 = arith.truncf %165 : vector<16x32xf32> to vector<16x32xbf16>
    %cst_60 = arith.constant dense<0.000000e+00> : vector<16x32xf32>
    %168 = tpu.matmul %167, %166, %cst_60 {dimension_numbers = #tpu.dot_dimension_numbers<[1], [0], [0], [1], [0, 0, 1, 1], [], []>} : vector<16x32xbf16>, vector<32x32xbf16>, vector<16x32xf32> -> vector<16x32xf32>
    %169 = vector.broadcast %113 : vector<1x32xf32> to vector<16x32xf32>
    %170 = arith.addf %168, %169 : vector<16x32xf32>
    %171 = arith.addf %110, %170 : vector<16x32xf32>
    %172 = arith.mulf %171, %171 : vector<16x32xf32>
    %cst_61 = arith.constant dense<0.000000e+00> : vector<16xf32>
    %173 = vector.multi_reduction <add>, %172, %cst_61 [1] : vector<16x32xf32> to vector<16xf32>
    %174 = vector.shape_cast %173 : vector<16xf32> to vector<16x1xf32>
    %cst_62 = arith.constant 3.200000e+01 : f32
    %175 = vector.broadcast %cst_62 : f32 to vector<16x1xf32>
    %176 = arith.divf %174, %175 : vector<16x1xf32>
    %cst_63 = arith.constant 9.99999974E-6 : f32
    %177 = vector.broadcast %cst_63 : f32 to vector<16x1xf32>
    %178 = arith.addf %176, %177 : vector<16x1xf32>
    %179 = math.rsqrt %178 : vector<16x1xf32>
    %180 = vector.broadcast %179 : vector<16x1xf32> to vector<16x32xf32>
    %181 = arith.mulf %171, %180 : vector<16x32xf32>
    %182 = vector.broadcast %112 : vector<1x32xf32> to vector<16x32xf32>
    %183 = arith.mulf %181, %182 : vector<16x32xf32>
    %184 = arith.truncf %183 : vector<16x32xf32> to vector<16x32xbf16>
    %c576 = arith.constant 576 : index
    %c0_64 = arith.constant 0 : index
    %185 = vector.load %arg1[%c576, %c0_64] : memref<736x128xbf16, #tpu.memory_space<vmem>>, vector<32x128xbf16>
    %cst_65 = arith.constant dense<0.000000e+00> : vector<16x128xf32>
    %186 = tpu.matmul %184, %185, %cst_65 {dimension_numbers = #tpu.dot_dimension_numbers<[1], [0], [0], [1], [0, 0, 1, 1], [], []>} : vector<16x32xbf16>, vector<32x128xbf16>, vector<16x128xf32> -> vector<16x128xf32>
    %187 = vector.broadcast %115 : vector<1x128xf32> to vector<16x128xf32>
    %188 = arith.addf %186, %187 : vector<16x128xf32>
    %189 = arith.mulf %188, %188 : vector<16x128xf32>
    %190 = arith.mulf %188, %189 : vector<16x128xf32>
    %cst_66 = arith.constant 4.471500e-02 : f32
    %191 = vector.broadcast %cst_66 : f32 to vector<16x128xf32>
    %192 = arith.mulf %191, %190 : vector<16x128xf32>
    %193 = arith.addf %188, %192 : vector<16x128xf32>
    %cst_67 = arith.constant 0.797884583 : f32
    %194 = vector.broadcast %cst_67 : f32 to vector<16x128xf32>
    %195 = arith.mulf %194, %193 : vector<16x128xf32>
    %196 = math.tanh %195 : vector<16x128xf32>
    %cst_68 = arith.constant 1.000000e+00 : f32
    %197 = vector.broadcast %cst_68 : f32 to vector<16x128xf32>
    %198 = arith.addf %197, %196 : vector<16x128xf32>
    %cst_69 = arith.constant 5.000000e-01 : f32
    %199 = vector.broadcast %cst_69 : f32 to vector<16x128xf32>
    %200 = arith.mulf %199, %198 : vector<16x128xf32>
    %201 = arith.mulf %188, %200 : vector<16x128xf32>
    %c608 = arith.constant 608 : index
    %c0_70 = arith.constant 0 : index
    %202 = vector.load %arg1[%c608, %c0_70] : memref<736x128xbf16, #tpu.memory_space<vmem>>, vector<128x32xbf16>
    %203 = arith.truncf %201 : vector<16x128xf32> to vector<16x128xbf16>
    %cst_71 = arith.constant dense<0.000000e+00> : vector<16x32xf32>
    %204 = tpu.matmul %203, %202, %cst_71 {dimension_numbers = #tpu.dot_dimension_numbers<[1], [0], [0], [1], [0, 0, 1, 1], [], []>} : vector<16x128xbf16>, vector<128x32xbf16>, vector<16x32xf32> -> vector<16x32xf32>
    %205 = vector.broadcast %114 : vector<1x32xf32> to vector<16x32xf32>
    %206 = arith.addf %204, %205 : vector<16x32xf32>
    %207 = arith.addf %171, %206 : vector<16x32xf32>
    %c324 = arith.constant 324 : index
    %c0_72 = arith.constant 0 : index
    %208 = vector.load %arg2[%c324, %c0_72] : memref<328x128xf32, #tpu.memory_space<vmem>>, vector<1x32xf32>
    %209 = arith.mulf %207, %207 : vector<16x32xf32>
    %cst_73 = arith.constant dense<0.000000e+00> : vector<16xf32>
    %210 = vector.multi_reduction <add>, %209, %cst_73 [1] : vector<16x32xf32> to vector<16xf32>
    %211 = vector.shape_cast %210 : vector<16xf32> to vector<16x1xf32>
    %cst_74 = arith.constant 3.200000e+01 : f32
    %212 = vector.broadcast %cst_74 : f32 to vector<16x1xf32>
    %213 = arith.divf %211, %212 : vector<16x1xf32>
    %cst_75 = arith.constant 9.99999974E-6 : f32
    %214 = vector.broadcast %cst_75 : f32 to vector<16x1xf32>
    %215 = arith.addf %213, %214 : vector<16x1xf32>
    %216 = math.rsqrt %215 : vector<16x1xf32>
    %217 = vector.broadcast %216 : vector<16x1xf32> to vector<16x32xf32>
    %218 = arith.mulf %207, %217 : vector<16x32xf32>
    %219 = vector.broadcast %208 : vector<1x32xf32> to vector<16x32xf32>
    %220 = arith.mulf %218, %219 : vector<16x32xf32>
    %221 = arith.truncf %220 : vector<16x32xf32> to vector<16x32xbf16>
    %c64_76 = arith.constant 64 : index
    %c0_77 = arith.constant 0 : index
    %222 = vector.load %arg1[%c64_76, %c0_77] : memref<736x128xbf16, #tpu.memory_space<vmem>>, vector<32x128xbf16>
    %c325 = arith.constant 325 : index
    %c0_78 = arith.constant 0 : index
    %223 = vector.load %arg2[%c325, %c0_78] : memref<328x128xf32, #tpu.memory_space<vmem>>, vector<1x128xf32>
    %cst_79 = arith.constant dense<0.000000e+00> : vector<16x128xf32>
    %224 = tpu.matmul %221, %222, %cst_79 {dimension_numbers = #tpu.dot_dimension_numbers<[1], [0], [0], [1], [0, 0, 1, 1], [], []>} : vector<16x32xbf16>, vector<32x128xbf16>, vector<16x128xf32> -> vector<16x128xf32>
    %225 = vector.broadcast %223 : vector<1x128xf32> to vector<16x128xf32>
    %226 = arith.addf %224, %225 : vector<16x128xf32>
    %c0_80 = arith.constant 0 : index
    %c0_81 = arith.constant 0 : index
    %227 = vector.load %arg3[%c0_80, %c0_81] : memref<16x128xf32, #tpu.memory_space<vmem>>, vector<16x128xf32>
    tpu.vector_store %arg3[%c0_80, %c0_81], %226 {strides = array<i32>} : memref<16x128xf32, #tpu.memory_space<vmem>>, vector<16x128xf32>,
    return
  }
}

</mosaic_0001>

<llo_original>
// kernel: tiny_gpt_forward.1
$region0: #{tiny_gpt_forward.1}
  #allocation0 [shape = 'u32[]', space=smem, size = 0x4, offset = 0x4, fixed_abs, tag = 'smem constant byte address 0x4 - core index']
  #allocation1 [shape = 'u32[144,128]{1,0:T(1,128)}', space=vmem, size = 0x12000, scoped, tag = 'internal scratch']
  %s0 = inlined_call_operand.vmem [shape: s32[16,1], index: 0, kind: input, shape index: {}]
  %s1 = inlined_call_operand.hbm [shape: bf16[736,128], index: 1, kind: input, shape index: {}]
  %s2 = inlined_call_operand.hbm [shape: f32[328,128], index: 2, kind: input, shape index: {}]
  %s3 = inlined_call_operand.vmem [shape: f32[16,128], index: 3, kind: output, shape index: {}]
  %s4 = sld [smem:[#allocation0]]
  $region30: #{tiny_gpt_forward.1} parent=0
    _
  %s6 = ssub.s32 1, %s4
  %s7 = scalar_select 0, %s6, %s4
  $region1: #{tiny_gpt_forward.1} parent=0
    #allocation2 [shape = 'u8[188416]{0}', space=vmem, size = 0x2e000, scoped, tag = 'input window, operand 1, single buffered']
    #allocation3 [shape = 's32[1]{0}', space=sflag, size = 0x4, scoped, tag = 'scoped memory for tiny_gpt_forward.1']
    #allocation4 [shape = 'u8[167936]{0}', space=vmem, size = 0x29000, scoped, tag = 'input window, operand 2, single buffered']
    #allocation5 [shape = 's32[1]{0}', space=sflag, size = 0x4, scoped, tag = 'scoped memory for tiny_gpt_forward.1']
    %8 = vsyncpa [#allocation3], 0
    %9 = vsyncpa [#allocation5], 0
    // Predicated region
    $region2: #{tiny_gpt_forward.1} parent=1 // pred_check
      _
    $region3: #{tiny_gpt_forward.1} parent=1 // pred_check_branch
      %11 = sbr.rel (0) target = $region5
    $region4: #{tiny_gpt_forward.1} parent=1 // pred_region
      _
    $region5: #{tiny_gpt_forward.1} parent=1 // pred_fallthru
      _
    // Predicated region
    $region6: #{tiny_gpt_forward.1} parent=1 // pred_check
      _
    $region7: #{tiny_gpt_forward.1} parent=1 // pred_check_branch
      %13 = sbr.rel (0) target = $region9
    $region8: #{tiny_gpt_forward.1} parent=1 // pred_region
      %s15 = ssub.s32 5888, 5888
      %16 = vsyncadd [#allocation3], %s15
      %s17 = sshll.u32 [#allocation2], 4
      %s18 = int_to_ptr.vmem [resolvable:$true] %s17
      %23 = dma.hbm_to_vmem [thread:$0]  %s1, 5888, %s18, [#allocation3], 64, 64, 4
    $region9: #{tiny_gpt_forward.1} parent=1 // pred_fallthru
      _
    // Predicated region
    $region10: #{tiny_gpt_forward.1} parent=1 // pred_check
      _
    $region11: #{tiny_gpt_forward.1} parent=1 // pred_check_branch
      %25 = sbr.rel (0) target = $region13
    $region12: #{tiny_gpt_forward.1} parent=1 // pred_region
      %s27 = ssub.s32 5248, 5248
      %28 = vsyncadd [#allocation5], %s27
      %s29 = sshll.u32 [#allocation4], 4
      %s30 = int_to_ptr.vmem [resolvable:$true] %s29
      %35 = dma.hbm_to_vmem [thread:$0]  %s2, 5248, %s30, [#allocation5], 128, 128, 8
    $region13: #{tiny_gpt_forward.1} parent=1 // pred_fallthru
      _
    // Predicated region
    $region14: #{tiny_gpt_forward.1} parent=1 // pred_check
      _
    $region15: #{tiny_gpt_forward.1} parent=1 // pred_check_branch
      %37 = sbr.rel (0) target = $region17
    $region16: #{tiny_gpt_forward.1} parent=1 // pred_region
      %38 = dma.done [#allocation3], 5888
    $region17: #{tiny_gpt_forward.1} parent=1 // pred_fallthru
      _
    // Predicated region
    $region18: #{tiny_gpt_forward.1} parent=1 // pred_check
      _
    $region19: #{tiny_gpt_forward.1} parent=1 // pred_check_branch
      %40 = sbr.rel (0) target = $region21
    $region20: #{tiny_gpt_forward.1} parent=1 // pred_region
      %41 = dma.done [#allocation5], 5248
    $region21: #{tiny_gpt_forward.1} parent=1 // pred_fallthru
      _
    %v43 = vld [vmem:[#allocation4] sm:$0xff]
    %v44 = vld [vmem:[#allocation4 + $0x8] sm:$0xff]
    %v45 = vld [vmem:[#allocation4 + $0x10] sm:$0xff]
    %v46 = vld [vmem:[#allocation4 + $0x18] sm:$0xff]
    %v47 = vld [vmem:[#allocation4 + $0x20] sm:$0xff]
    %v48 = vld [vmem:[#allocation4 + $0x28] sm:$0xff]
    %v49 = vld [vmem:[#allocation4 + $0x30] sm:$0xff]
    %v50 = vld [vmem:[#allocation4 + $0x38] sm:$0xff]
    %v51 = vld [vmem:[#allocation4 + $0x40] sm:$0xff]
    %v52 = vld [vmem:[#allocation4 + $0x48] sm:$0xff]
    %v53 = vld [vmem:[#allocation4 + $0x50] sm:$0xff]
    %v54 = vld [vmem:[#allocation4 + $0x58] sm:$0xff]
    %v55 = vld [vmem:[#allocation4 + $0x60] sm:$0xff]
    %v56 = vld [vmem:[#allocation4 + $0x68] sm:$0xff]
    %v57 = vld [vmem:[#allocation4 + $0x70] sm:$0xff]
    %v58 = vld [vmem:[#allocation4 + $0x78] sm:$0xff]
    %v59 = vld [vmem:[#allocation4 + $0x80] sm:$0xff]
    %v60 = vld [vmem:[#allocation4 + $0x88] sm:$0xff]
    %v61 = vld [vmem:[#allocation4 + $0x90] sm:$0xff]
    %v62 = vld [vmem:[#allocation4 + $0x98] sm:$0xff]
    %v63 = vld [vmem:[#allocation4 + $0xa0] sm:$0xff]
    %v64 = vld [vmem:[#allocation4 + $0xa8] sm:$0xff]
    %v65 = vld [vmem:[#allocation4 + $0xb0] sm:$0xff]
    %v66 = vld [vmem:[#allocation4 + $0xb8] sm:$0xff]
    %v67 = vld [vmem:[%s0] sm:$0xff]
    %v68 = vld [vmem:[%s0 + $0x8] sm:$0xff]
    %v69 = vlaneseq
    %v70 = vand.u32 %v69, 127
    %71 = vset.pattern.permute.xlu0 0
    %72 = vperm.xlu0 %71, %v67
    %v73 = vpop.permute.xlu0 %72
    %74 = vset.pattern.permute.xlu0 0
    %75 = vperm.xlu0 %74, %v68
    %v76 = vpop.permute.xlu0 %75
    %vm77 = vcmp.eq.s32.totalorder %v70, %v73
    %vm78 = vcmp.eq.s32.totalorder %v70, %v76
    %v79 = vsel %vm77, 1.0, 0.0
    %v80 = vsel %vm78, 1.0, 0.0
    %v81 = vpack.c.bf16 %v80, %v79
    %v82 = vld [vmem:[#allocation2] sm:$0xf]
    %v83 = vld [vmem:[#allocation2 + $0x4] sm:$0xf]
    %v84 = vld [vmem:[#allocation2 + $0x8] sm:$0xf]
    %v85 = vld [vmem:[#allocation2 + $0xc] sm:$0xf]
    %v86 = vld [vmem:[#allocation2 + $0x10] sm:$0xf]
    %v87 = vld [vmem:[#allocation2 + $0x14] sm:$0xf]
    %v88 = vld [vmem:[#allocation2 + $0x18] sm:$0xf]
    %v89 = vld [vmem:[#allocation2 + $0x1c] sm:$0xf]
    %v98 = vunpack.c.l.b16 %v82
    %v99 = vunpack.c.l.b16 %v83
    %v100 = vunpack.c.l.b16 %v84
    %v101 = vunpack.c.l.b16 %v85
    %v102 = vunpack.c.l.b16 %v86
    %v103 = vunpack.c.l.b16 %v87
    %v104 = vunpack.c.l.b16 %v88
    %v105 = vunpack.c.l.b16 %v89
    %v106 = vpack.c.b16 %v99, %v98
    %v107 = vpack.c.b16 %v101, %v100
    %v108 = vpack.c.b16 %v103, %v102
    %v109 = vpack.c.b16 %v105, %v104
    %vm114 = vcmask 523264
    %v116 = vsel %vm114, %v81, 0
    %118 = vmatprep.subr.bf16.mxu0 0
    %119 = vmatpush1.bf16.msra.mxu0 %v106
    %120 = vmatprep.subr.bf16.mxu0 0
    %121 = vmatpush1.bf16.msra.mxu0 %v107
    %122 = vmatprep.subr.bf16.mxu0 0
    %123 = vmatpush1.bf16.msra.mxu0 %v108
    %124 = vmatprep.subr.bf16.mxu0 0
    %125 = vmatpush1.bf16.msra.mxu0 %v109
    %126 = vmatprep.subr.bf16.mxu0 0
    %127 = vmatpush1.bf16.msra.mxu0 0
    %128 = vmatprep.subr.bf16.mxu0 0
    %129 = vmatpush1.bf16.msra.mxu0 0
    %130 = vmatprep.subr.bf16.mxu0 0
    %131 = vmatpush1.bf16.msra.mxu0 0
    %132 = vmatprep.subr.bf16.mxu0 0
    %133 = vmatpush1.bf16.msra.mxu0 0
    %134 = vmatprep.subr.bf16.mxu0 0
    %135 = vmatpush1.bf16.msra.mxu0 0
    %136 = vmatprep.subr.bf16.mxu0 0
    %137 = vmatpush1.bf16.msra.mxu0 0
    %138 = vmatprep.subr.bf16.mxu0 0
    %139 = vmatpush1.bf16.msra.mxu0 0
    %140 = vmatprep.subr.bf16.mxu0 0
    %141 = vmatpush1.bf16.msra.mxu0 0
    %142 = vmatprep.subr.bf16.mxu0 0
    %143 = vmatpush1.bf16.msra.mxu0 0
    %144 = vmatprep.subr.bf16.mxu0 0
    %145 = vmatpush1.bf16.msra.mxu0 0
    %146 = vmatprep.subr.bf16.mxu0 0
    %147 = vmatpush1.bf16.msra.mxu0 0
    %148 = vmatprep.subr.bf16.mxu0 0
    %149 = vmatpush1.bf16.msra.mxu0 0
    %150 = vmatprep.mubr.bf16.mxu0 0
    %151 = vmatmul.mubr.bf16.gmra.mrb[0].mxu0 %v116
    %v152 = vpop.f32.mrb[0].mxu0
    %v153 = vadd.f32 0.0, %v152
    %v154 = vpop.f32.mrb[0].mxu0
    %v155 = vpop.f32.mrb[0].mxu0
    %v156 = vadd.f32 0.0, %v155
    %v157 = vpop.f32.mrb[0].mxu0
    %158 = vdwg.mxu0
    %v159 = vld [vmem:[#allocation4 + $0x140] sm:$0x1]
    %v160 = vld [vmem:[#allocation4 + $0x142] sm:$0x1]
    %v161 = vld [vmem:[#allocation4 + $0xc0] sm:$0xff]
    %v162 = vld [vmem:[#allocation4 + $0xc8] sm:$0xff]
    %v163 = vld [vmem:[#allocation4 + $0xd0] sm:$0xff]
    %v164 = vld [vmem:[#allocation4 + $0xd8] sm:$0xff]
    %v165 = vld [vmem:[#allocation4 + $0xe0] sm:$0xff]
    %v166 = vld [vmem:[#allocation4 + $0xe8] sm:$0xff]
    %v167 = vld [vmem:[#allocation4 + $0xf0] sm:$0xff]
    %v168 = vld [vmem:[#allocation4 + $0xf8] sm:$0xff]
    %v169 = vmul.f32 %v153, %v153
    %v170 = vmul.f32 %v156, %v156
    %vm171 = vcmask 261120
    %v172 = vsel %vm171, %v169, 0.0
    %173 = vadd.xlane.f32.xlu0 %v172
    %v174 = vpop.xlane.xlu0 %173
    %v175 = vsel %vm171, %v170, 0.0
    %176 = vadd.xlane.f32.xlu0 %v175
    %v177 = vpop.xlane.xlu0 %176
    %v178 = vrcp.pop 32.0
    %v179 = vmul.f32 %v174, %v178
    %v180 = vmul.f32 %v177, %v178
    %v181 = vadd.f32 %v179, 1e-05
    %v182 = vadd.f32 %v180, 1e-05
    %v183 = vrsqrt.pop %v181
    %v184 = vrsqrt.pop %v182
    %v185 = vmul.f32 %v153, %v183
    %v186 = vmul.f32 %v156, %v184
    %v187 = vlaneseq
    %v188 = vshrl.u32 %v187, 7
    %v189 = vsub.s32 0, %v188
    %v190 = vrot.slane %v159, %v189
    %v191 = vmul.f32 %v185, %v190
    %v192 = vmul.f32 %v186, %v190
    %195 = vrot.lane.b32.xlu0 %v191, 32
    %v196 = vpop.permute.xlu0 %195
    %197 = vrot.lane.b32.xlu0 %v192, 32
    %v198 = vpop.permute.xlu0 %197
    %201 = vrot.lane.b32.xlu0 %v191, 64
    %v202 = vpop.permute.xlu0 %201
    %203 = vrot.lane.b32.xlu0 %v192, 64
    %v204 = vpop.permute.xlu0 %203
    %207 = vrot.lane.b32.xlu0 %v191, 96
    %v208 = vpop.permute.xlu0 %207
    %209 = vrot.lane.b32.xlu0 %v192, 96
    %v210 = vpop.permute.xlu0 %209
    %v213 = vsel %vm171, %v191, %v196
    %v214 = vsel %vm171, %v192, %v198
    %v215 = vsel %vm114, %v213, %v202
    %v216 = vsel %vm114, %v214, %v204
    %vm217 = vcmask 785408
    %v218 = vsel %vm217, %v215, %v208
    %v219 = vsel %vm217, %v216, %v210
    %v220 = vmul.f32 %v218, %v59
    %v221 = vmul.f32 %v219, %v60
    %v222 = vmul.f32 %v218, %v61
    %v223 = vmul.f32 %v219, %v62
    %v224 = vmul.f32 %v218, %v63
    %v225 = vmul.f32 %v219, %v64
    %v226 = vmul.f32 %v218, %v65
    %v227 = vmul.f32 %v219, %v66
    %v228 = vpack.c.bf16 %v221, %v220
    %v229 = vpack.c.bf16 %v223, %v222
    %v230 = vpack.c.bf16 %v225, %v224
    %v231 = vpack.c.bf16 %v227, %v226
    %v232 = vld [vmem:[#allocation2 + $0x30] sm:$0xf]
    %v233 = vld [vmem:[#allocation2 + $0x34] sm:$0xf]
    %v234 = vld [vmem:[#allocation2 + $0x38] sm:$0xf]
    %v235 = vld [vmem:[#allocation2 + $0x3c] sm:$0xf]
    %v236 = vld [vmem:[#allocation2 + $0x40] sm:$0xf]
    %v237 = vld [vmem:[#allocation2 + $0x44] sm:$0xf]
    %v238 = vld [vmem:[#allocation2 + $0x48] sm:$0xf]
    %v239 = vld [vmem:[#allocation2 + $0x4c] sm:$0xf]
    %v240 = vld [vmem:[#allocation2 + $0x50] sm:$0xf]
    %v241 = vld [vmem:[#allocation2 + $0x54] sm:$0xf]
    %v242 = vld [vmem:[#allocation2 + $0x58] sm:$0xf]
    %v243 = vld [vmem:[#allocation2 + $0x5c] sm:$0xf]
    %v244 = vld [vmem:[#allocation2 + $0x60] sm:$0xf]
    %v245 = vld [vmem:[#allocation2 + $0x64] sm:$0xf]
    %v246 = vld [vmem:[#allocation2 + $0x68] sm:$0xf]
    %v247 = vld [vmem:[#allocation2 + $0x6c] sm:$0xf]
    %v264 = vunpack.c.l.b16 %v232
    %v265 = vunpack.c.l.b16 %v233
    %v266 = vunpack.c.l.b16 %v234
    %v267 = vunpack.c.l.b16 %v235
    %v268 = vunpack.c.l.b16 %v236
    %v269 = vunpack.c.l.b16 %v237
    %v270 = vunpack.c.l.b16 %v238
    %v271 = vunpack.c.l.b16 %v239
    %v272 = vunpack.c.l.b16 %v240
    %v273 = vunpack.c.l.b16 %v241
    %v274 = vunpack.c.l.b16 %v242
    %v275 = vunpack.c.l.b16 %v243
    %v276 = vunpack.c.l.b16 %v244
    %v277 = vunpack.c.l.b16 %v245
    %v278 = vunpack.c.l.b16 %v246
    %v279 = vunpack.c.l.b16 %v247
    %v280 = vpack.c.b16 %v265, %v264
    %v281 = vpack.c.b16 %v267, %v266
    %v282 = vpack.c.b16 %v269, %v268
    %v283 = vpack.c.b16 %v271, %v270
    %v284 = vpack.c.b16 %v273, %v272
    %v285 = vpack.c.b16 %v275, %v274
    %v286 = vpack.c.b16 %v277, %v276
    %v287 = vpack.c.b16 %v279, %v278
    %296 = vmatprep.subr.bf16.mxu0 0
    %297 = vmatpush1.bf16.msra.mxu0 %v280
    %298 = vmatprep.subr.bf16.mxu0 0
    %299 = vmatpush1.bf16.msra.mxu0 %v281
    %300 = vmatprep.subr.bf16.mxu0 0
    %301 = vmatpush1.bf16.msra.mxu0 %v282
    %302 = vmatprep.subr.bf16.mxu0 0
    %303 = vmatpush1.bf16.msra.mxu0 %v283
    %304 = vmatprep.subr.bf16.mxu0 0
    %305 = vmatpush1.bf16.msra.mxu0 %v284
    %306 = vmatprep.subr.bf16.mxu0 0
    %307 = vmatpush1.bf16.msra.mxu0 %v285
    %308 = vmatprep.subr.bf16.mxu0 0
    %309 = vmatpush1.bf16.msra.mxu0 %v286
    %310 = vmatprep.subr.bf16.mxu0 0
    %311 = vmatpush1.bf16.msra.mxu0 %v287
    %312 = vmatprep.subr.bf16.mxu0 0
    %313 = vmatpush1.bf16.msra.mxu0 0
    %314 = vmatprep.subr.bf16.mxu0 0
    %315 = vmatpush1.bf16.msra.mxu0 0
    %316 = vmatprep.subr.bf16.mxu0 0
    %317 = vmatpush1.bf16.msra.mxu0 0
    %318 = vmatprep.subr.bf16.mxu0 0
    %319 = vmatpush1.bf16.msra.mxu0 0
    %320 = vmatprep.subr.bf16.mxu0 0
    %321 = vmatpush1.bf16.msra.mxu0 0
    %322 = vmatprep.subr.bf16.mxu0 0
    %323 = vmatpush1.bf16.msra.mxu0 0
    %324 = vmatprep.subr.bf16.mxu0 0
    %325 = vmatpush1.bf16.msra.mxu0 0
    %326 = vmatprep.subr.bf16.mxu0 0
    %327 = vmatpush1.bf16.msra.mxu0 0
    %328 = vmatprep.mubr.bf16.mxu0 0
    %329 = vmatmul.mubr.bf16.gmra.mrb[0].mxu0 %v228
    %v330 = vpop.f32.mrb[0].mxu0
    %v331 = vadd.f32 %v161, %v330
    %v332 = vpop.f32.mrb[0].mxu0
    %v333 = vpop.f32.mrb[0].mxu0
    %v334 = vadd.f32 %v162, %v333
    %v335 = vpop.f32.mrb[0].mxu0
    %336 = vmatprep.mubr.bf16.mxu0 0
    %337 = vmatmul.mubr.bf16.gmra.mrb[0].mxu0 %v229
    %v338 = vpop.f32.mrb[0].mxu0
    %v339 = vadd.f32 %v163, %v338
    %v340 = vpop.f32.mrb[0].mxu0
    %v341 = vpop.f32.mrb[0].mxu0
    %v342 = vadd.f32 %v164, %v341
    %v343 = vpop.f32.mrb[0].mxu0
    %344 = vmatprep.mubr.bf16.mxu0 0
    %345 = vmatmul.mubr.bf16.gmra.mrb[0].mxu0 %v230
    %v346 = vpop.f32.mrb[0].mxu0
    %v347 = vadd.f32 %v165, %v346
    %v348 = vpop.f32.mrb[0].mxu0
    %v349 = vpop.f32.mrb[0].mxu0
    %v350 = vadd.f32 %v166, %v349
    %v351 = vpop.f32.mrb[0].mxu0
    %352 = vmatprep.mubr.bf16.mxu0 0
    %353 = vmatmul.mubr.bf16.gmra.mrb[0].mxu0 %v231
    %v354 = vpop.f32.mrb[0].mxu0
    %v355 = vadd.f32 %v167, %v354
    %v356 = vpop.f32.mrb[0].mxu0
    %v357 = vpop.f32.mrb[0].mxu0
    %v358 = vadd.f32 %v168, %v357
    %v359 = vpop.f32.mrb[0].mxu0
    %360 = vdwg.mxu0
    %v361 = vmul.f32 %v331, %v51
    %v362 = vmul.f32 %v334, %v52
    %v363 = vmul.f32 %v339, %v53
    %v364 = vmul.f32 %v342, %v54
    %v365 = vmul.f32 %v347, %v55
    %v366 = vmul.f32 %v350, %v56
    %v367 = vmul.f32 %v355, %v57
    %v368 = vmul.f32 %v358, %v58
    %377 = vrot.lane.b32.xlu0 %v51, 8
    %v378 = vpop.permute.xlu0 %377
    %379 = vrot.lane.b32.xlu0 %v52, 8
    %v380 = vpop.permute.xlu0 %379
    %381 = vrot.lane.b32.xlu0 %v53, 8
    %v382 = vpop.permute.xlu0 %381
    %383 = vrot.lane.b32.xlu0 %v54, 8
    %v384 = vpop.permute.xlu0 %383
    %385 = vrot.lane.b32.xlu0 %v55, 8
    %v386 = vpop.permute.xlu0 %385
    %387 = vrot.lane.b32.xlu0 %v56, 8
    %v388 = vpop.permute.xlu0 %387
    %389 = vrot.lane.b32.xlu0 %v57, 8
    %v390 = vpop.permute.xlu0 %389
    %391 = vrot.lane.b32.xlu0 %v58, 8
    %v392 = vpop.permute.xlu0 %391
    %v401 = vmul.f32 %v331, %v378
    %v402 = vmul.f32 %v334, %v380
    %v403 = vmul.f32 %v339, %v382
    %v404 = vmul.f32 %v342, %v384
    %v405 = vmul.f32 %v347, %v386
    %v406 = vmul.f32 %v350, %v388
    %v407 = vmul.f32 %v355, %v390
    %v408 = vmul.f32 %v358, %v392
    %417 = vrot.lane.b32.xlu0 %v401, 104
    %v418 = vpop.permute.xlu0 %417
    %419 = vrot.lane.b32.xlu0 %v402, 104
    %v420 = vpop.permute.xlu0 %419
    %421 = vrot.lane.b32.xlu0 %v403, 104
    %v422 = vpop.permute.xlu0 %421
    %423 = vrot.lane.b32.xlu0 %v404, 104
    %v424 = vpop.permute.xlu0 %423
    %425 = vrot.lane.b32.xlu0 %v405, 104
    %v426 = vpop.permute.xlu0 %425
    %427 = vrot.lane.b32.xlu0 %v406, 104
    %v428 = vpop.permute.xlu0 %427
    %429 = vrot.lane.b32.xlu0 %v407, 104
    %v430 = vpop.permute.xlu0 %429
    %431 = vrot.lane.b32.xlu0 %v408, 104
    %v432 = vpop.permute.xlu0 %431
    %v441 = vadd.f32 %v361, %v418
    %v442 = vadd.f32 %v362, %v420
    %v443 = vadd.f32 %v363, %v422
    %v444 = vadd.f32 %v364, %v424
    %v445 = vadd.f32 %v365, %v426
    %v446 = vadd.f32 %v366, %v428
    %v447 = vadd.f32 %v367, %v430
    %v448 = vadd.f32 %v368, %v432
    %v449 = vpack.c.bf16 %v442, %v441
    %v450 = vpack.c.bf16 %v444, %v443
    %v451 = vpack.c.bf16 %v446, %v445
    %v452 = vpack.c.bf16 %v448, %v447
    %v453 = vpack.c.bf16 %v334, %v331
    %v454 = vpack.c.bf16 %v342, %v339
    %v455 = vpack.c.bf16 %v350, %v347
    %v456 = vpack.c.bf16 %v358, %v355
    %461 = vrot.lane.b32.xlu0 %v449, 120
    %v462 = vpop.permute.xlu0 %461
    %463 = vrot.lane.b32.xlu0 %v450, 120
    %v464 = vpop.permute.xlu0 %463
    %465 = vrot.lane.b32.xlu0 %v451, 120
    %v466 = vpop.permute.xlu0 %465
    %467 = vrot.lane.b32.xlu0 %v452, 120
    %v468 = vpop.permute.xlu0 %467
    %vm469 = vcmask 64512
    %v471 = vsel %vm469, %v449, 0
    %v474 = vsel %vm469, %v450, 0
    %v477 = vsel %vm469, %v451, 0
    %v480 = vsel %vm469, %v452, 0
    %v483 = vsel %vm469, %v462, 0
    %v486 = vsel %vm469, %v464, 0
    %v489 = vsel %vm469, %v466, 0
    %v492 = vsel %vm469, %v468, 0
    %494 = vmatprep.subr.bf16.mxu0 0
    %495 = vmatpush1.bf16.xpose.msra.mxu0 %v483
    %496 = vmatprep.subr.bf16.mxu0 0
    %497 = vmatpush1.bf16.xpose.msra.mxu0 %v486
    %498 = vmatprep.subr.bf16.mxu0 0
    %499 = vmatpush1.bf16.xpose.msra.mxu0 %v489
    %500 = vmatprep.subr.bf16.mxu0 0
    %501 = vmatpush1.bf16.xpose.msra.mxu0 %v492
    %502 = vmatprep.subr.bf16.mxu0 0
    %503 = vmatpush1.bf16.xpose.msra.mxu0 0
    %504 = vmatprep.subr.bf16.mxu0 0
    %505 = vmatpush1.bf16.xpose.msra.mxu0 0
    %506 = vmatprep.subr.bf16.mxu0 0
    %507 = vmatpush1.bf16.xpose.msra.mxu0 0
    %508 = vmatprep.subr.bf16.mxu0 0
    %509 = vmatpush1.bf16.xpose.msra.mxu0 0
    %510 = vmatprep.subr.bf16.mxu0 0
    %511 = vmatpush1.bf16.xpose.msra.mxu0 0
    %512 = vmatprep.subr.bf16.mxu0 0
    %513 = vmatpush1.bf16.xpose.msra.mxu0 0
    %514 = vmatprep.subr.bf16.mxu0 0
    %515 = vmatpush1.bf16.xpose.msra.mxu0 0
    %516 = vmatprep.subr.bf16.mxu0 0
    %517 = vmatpush1.bf16.xpose.msra.mxu0 0
    %518 = vmatprep.subr.bf16.mxu0 0
    %519 = vmatpush1.bf16.xpose.msra.mxu0 0
    %520 = vmatprep.subr.bf16.mxu0 0
    %521 = vmatpush1.bf16.xpose.msra.mxu0 0
    %522 = vmatprep.subr.bf16.mxu0 0
    %523 = vmatpush1.bf16.xpose.msra.mxu0 0
    %524 = vmatprep.subr.bf16.mxu0 0
    %525 = vmatpush1.bf16.xpose.msra.mxu0 0
    %526 = vmatprep.mubr.bf16.mxu0 0
    %527 = vmatmul.mubr.bf16.gmra.mrb[0].mxu0 %v471
    %v528 = vpop.f32.mrb[0].mxu0
    %v529 = vadd.f32 %v43, %v528
    %v530 = vpop.f32.mrb[0].mxu0
    %v531 = vpop.f32.mrb[0].mxu0
    %v532 = vadd.f32 %v44, %v531
    %v533 = vpop.f32.mrb[0].mxu0
    %534 = vmatprep.mubr.bf16.mxu0 0
    %535 = vmatmul.mubr.bf16.gmra.mrb[0].mxu0 %v474
    %v536 = vpop.f32.mrb[0].mxu0
    %v537 = vadd.f32 %v45, %v536
    %v538 = vpop.f32.mrb[0].mxu0
    %v539 = vpop.f32.mrb[0].mxu0
    %v540 = vadd.f32 %v46, %v539
    %v541 = vpop.f32.mrb[0].mxu0
    %542 = vmatprep.mubr.bf16.mxu0 0
    %543 = vmatmul.mubr.bf16.gmra.mrb[0].mxu0 %v477
    %v544 = vpop.f32.mrb[0].mxu0
    %v545 = vadd.f32 %v47, %v544
    %v546 = vpop.f32.mrb[0].mxu0
    %v547 = vpop.f32.mrb[0].mxu0
    %v548 = vadd.f32 %v48, %v547
    %v549 = vpop.f32.mrb[0].mxu0
    %550 = vmatprep.mubr.bf16.mxu0 0
    %551 = vmatmul.mubr.bf16.gmra.mrb[0].mxu0 %v480
    %v552 = vpop.f32.mrb[0].mxu0
    %v553 = vadd.f32 %v49, %v552
    %v554 = vpop.f32.mrb[0].mxu0
    %v555 = vpop.f32.mrb[0].mxu0
    %v556 = vadd.f32 %v50, %v555
    %v557 = vpop.f32.mrb[0].mxu0
    %558 = vdwg.mxu0
    %v559 = vsel %vm114, %v529, -inf
    %560 = vmax.xlane.f32.xlu0 %v559
    %v561 = vpop.xlane.xlu0 %560
    %v562 = vsel %vm114, %v532, -inf
    %563 = vmax.xlane.f32.xlu0 %v562
    %v564 = vpop.xlane.xlu0 %563
    %v565 = vsel %vm114, %v537, -inf
    %566 = vmax.xlane.f32.xlu0 %v565
    %v567 = vpop.xlane.xlu0 %566
    %v568 = vsel %vm114, %v540, -inf
    %569 = vmax.xlane.f32.xlu0 %v568
    %v570 = vpop.xlane.xlu0 %569
    %v571 = vsel %vm114, %v545, -inf
    %572 = vmax.xlane.f32.xlu0 %v571
    %v573 = vpop.xlane.xlu0 %572
    %v574 = vsel %vm114, %v548, -inf
    %575 = vmax.xlane.f32.xlu0 %v574
    %v576 = vpop.xlane.xlu0 %575
    %v577 = vsel %vm114, %v553, -inf
    %578 = vmax.xlane.f32.xlu0 %v577
    %v579 = vpop.xlane.xlu0 %578
    %v580 = vsel %vm114, %v556, -inf
    %581 = vmax.xlane.f32.xlu0 %v580
    %v582 = vpop.xlane.xlu0 %581
    %v583 = vsub.f32 %v529, %v561
    %v584 = vsub.f32 %v532, %v564
    %v585 = vsub.f32 %v537, %v567
    %v586 = vsub.f32 %v540, %v570
    %v587 = vsub.f32 %v545, %v573
    %v588 = vsub.f32 %v548, %v576
    %v589 = vsub.f32 %v553, %v579
    %v590 = vsub.f32 %v556, %v582
    %v591 = vmul.f32 %v583, 1.442695
    %v592 = vpow.pop %v591
    %v593 = vmul.f32 %v584, 1.442695
    %v594 = vpow.pop %v593
    %v595 = vmul.f32 %v585, 1.442695
    %v596 = vpow.pop %v595
    %v597 = vmul.f32 %v586, 1.442695
    %v598 = vpow.pop %v597
    %v599 = vmul.f32 %v587, 1.442695
    %v600 = vpow.pop %v599
    %v601 = vmul.f32 %v588, 1.442695
    %v602 = vpow.pop %v601
    %v603 = vmul.f32 %v589, 1.442695
    %v604 = vpow.pop %v603
    %v605 = vmul.f32 %v590, 1.442695
    %v606 = vpow.pop %v605
    %v607 = vsel %vm114, %v592, 0.0
    %608 = vadd.xlane.f32.xlu0 %v607
    %v609 = vpop.xlane.xlu0 %608
    %v610 = vsel %vm114, %v594, 0.0
    %611 = vadd.xlane.f32.xlu0 %v610
    %v612 = vpop.xlane.xlu0 %611
    %v613 = vsel %vm114, %v596, 0.0
    %614 = vadd.xlane.f32.xlu0 %v613
    %v615 = vpop.xlane.xlu0 %614
    %v616 = vsel %vm114, %v598, 0.0
    %617 = vadd.xlane.f32.xlu0 %v616
    %v618 = vpop.xlane.xlu0 %617
    %v619 = vsel %vm114, %v600, 0.0
    %620 = vadd.xlane.f32.xlu0 %v619
    %v621 = vpop.xlane.xlu0 %620
    %v622 = vsel %vm114, %v602, 0.0
    %623 = vadd.xlane.f32.xlu0 %v622
    %v624 = vpop.xlane.xlu0 %623
    %v625 = vsel %vm114, %v604, 0.0
    %626 = vadd.xlane.f32.xlu0 %v625
    %v627 = vpop.xlane.xlu0 %626
    %v628 = vsel %vm114, %v606, 0.0
    %629 = vadd.xlane.f32.xlu0 %v628
    %v630 = vpop.xlane.xlu0 %629
    %v631 = vrcp.pop %v609
    %v632 = vrcp.pop %v612
    %v633 = vrcp.pop %v615
    %v634 = vrcp.pop %v618
    %v635 = vrcp.pop %v621
    %v636 = vrcp.pop %v624
    %v637 = vrcp.pop %v627
    %v638 = vrcp.pop %v630
    %v639 = vmul.f32 %v592, %v631
    %v640 = vmul.f32 %v594, %v632
    %v641 = vmul.f32 %v596, %v633
    %v642 = vmul.f32 %v598, %v634
    %v643 = vmul.f32 %v600, %v635
    %v644 = vmul.f32 %v602, %v636
    %v645 = vmul.f32 %v604, %v637
    %v646 = vmul.f32 %v606, %v638
    %v647 = vpack.c.bf16 %v640, %v639
    %v648 = vpack.c.bf16 %v642, %v641
    %v649 = vpack.c.bf16 %v644, %v643
    %v650 = vpack.c.bf16 %v646, %v645
    %655 = vrot.lane.b32.xlu0 %v453, 112
    %v656 = vpop.permute.xlu0 %655
    %657 = vrot.lane.b32.xlu0 %v454, 112
    %v658 = vpop.permute.xlu0 %657
    %659 = vrot.lane.b32.xlu0 %v455, 112
    %v660 = vpop.permute.xlu0 %659
    %661 = vrot.lane.b32.xlu0 %v456, 112
    %v662 = vpop.permute.xlu0 %661
    %v668 = vsel %vm114, %v647, 0
    %v671 = vsel %vm114, %v648, 0
    %v674 = vsel %vm114, %v649, 0
    %v677 = vsel %vm114, %v650, 0
    %679 = vmatprep.subr.bf16.mxu0 0
    %680 = vmatpush1.bf16.msra.mxu0 %v656
    %681 = vmatprep.subr.bf16.mxu0 0
    %682 = vmatpush1.bf16.msra.mxu0 %v658
    %683 = vmatprep.subr.bf16.mxu0 0
    %684 = vmatpush1.bf16.msra.mxu0 %v660
    %685 = vmatprep.subr.bf16.mxu0 0
    %686 = vmatpush1.bf16.msra.mxu0 %v662
    %687 = vmatprep.subr.bf16.mxu0 0
    %688 = vmatpush1.bf16.msra.mxu0 0
    %689 = vmatprep.subr.bf16.mxu0 0
    %690 = vmatpush1.bf16.msra.mxu0 0
    %691 = vmatprep.subr.bf16.mxu0 0
    %692 = vmatpush1.bf16.msra.mxu0 0
    %693 = vmatprep.subr.bf16.mxu0 0
    %694 = vmatpush1.bf16.msra.mxu0 0
    %695 = vmatprep.subr.bf16.mxu0 0
    %696 = vmatpush1.bf16.msra.mxu0 0
    %697 = vmatprep.subr.bf16.mxu0 0
    %698 = vmatpush1.bf16.msra.mxu0 0
    %699 = vmatprep.subr.bf16.mxu0 0
    %700 = vmatpush1.bf16.msra.mxu0 0
    %701 = vmatprep.subr.bf16.mxu0 0
    %702 = vmatpush1.bf16.msra.mxu0 0
    %703 = vmatprep.subr.bf16.mxu0 0
    %704 = vmatpush1.bf16.msra.mxu0 0
    %705 = vmatprep.subr.bf16.mxu0 0
    %706 = vmatpush1.bf16.msra.mxu0 0
    %707 = vmatprep.subr.bf16.mxu0 0
    %708 = vmatpush1.bf16.msra.mxu0 0
    %709 = vmatprep.subr.bf16.mxu0 0
    %710 = vmatpush1.bf16.msra.mxu0 0
    %711 = vmatprep.mubr.bf16.mxu0 0
    %712 = vmatmul.mubr.bf16.gmra.mrb[0].mxu0 %v668
    %v713 = vpop.f32.mrb[0].mxu0
    %v714 = vadd.f32 0.0, %v713
    %v715 = vpop.f32.mrb[0].mxu0
    %v716 = vpop.f32.mrb[0].mxu0
    %v717 = vadd.f32 0.0, %v716
    %v718 = vpop.f32.mrb[0].mxu0
    %719 = vmatprep.mubr.bf16.mxu0 0
    %720 = vmatmul.mubr.bf16.gmra.mrb[0].mxu0 %v671
    %v721 = vpop.f32.mrb[0].mxu0
    %v722 = vadd.f32 0.0, %v721
    %v723 = vpop.f32.mrb[0].mxu0
    %v724 = vpop.f32.mrb[0].mxu0
    %v725 = vadd.f32 0.0, %v724
    %v726 = vpop.f32.mrb[0].mxu0
    %727 = vmatprep.mubr.bf16.mxu0 0
    %728 = vmatmul.mubr.bf16.gmra.mrb[0].mxu0 %v674
    %v729 = vpop.f32.mrb[0].mxu0
    %v730 = vadd.f32 0.0, %v729
    %v731 = vpop.f32.mrb[0].mxu0
    %v732 = vpop.f32.mrb[0].mxu0
    %v733 = vadd.f32 0.0, %v732
    %v734 = vpop.f32.mrb[0].mxu0
    %735 = vmatprep.mubr.bf16.mxu0 0
    %736 = vmatmul.mubr.bf16.gmra.mrb[0].mxu0 %v677
    %v737 = vpop.f32.mrb[0].mxu0
    %v738 = vadd.f32 0.0, %v737
    %v739 = vpop.f32.mrb[0].mxu0
    %v740 = vpop.f32.mrb[0].mxu0
    %v741 = vadd.f32 0.0, %v740
    %v742 = vpop.f32.mrb[0].mxu0
    %743 = vdwg.mxu0
    %746 = vrot.lane.b32.xlu0 %v722, 8
    %v747 = vpop.permute.xlu0 %746
    %748 = vrot.lane.b32.xlu0 %v725, 8
    %v749 = vpop.permute.xlu0 %748
    %754 = vrot.lane.b32.xlu0 %v730, 16
    %v755 = vpop.permute.xlu0 %754
    %756 = vrot.lane.b32.xlu0 %v733, 16
    %v757 = vpop.permute.xlu0 %756
    %762 = vrot.lane.b32.xlu0 %v738, 24
    %v763 = vpop.permute.xlu0 %762
    %764 = vrot.lane.b32.xlu0 %v741, 24
    %v765 = vpop.permute.xlu0 %764
    %v768 = vsel %vm469, %v714, %v747
    %v769 = vsel %vm469, %v717, %v749
    %vm770 = vcmask 130048
    %v771 = vsel %vm770, %v768, %v755
    %v772 = vsel %vm770, %v769, %v757
    %vm773 = vcmask 195584
    %v774 = vsel %vm773, %v771, %v763
    %v775 = vsel %vm773, %v772, %v765
    %v776 = vld [vmem:[#allocation2 + $0x70] sm:$0xf]
    %v777 = vld [vmem:[#allocation2 + $0x74] sm:$0xf]
    %v778 = vld [vmem:[#allocation2 + $0x78] sm:$0xf]
    %v779 = vld [vmem:[#allocation2 + $0x7c] sm:$0xf]
    %v780 = vpack.c.bf16 %v775, %v774
    %v785 = vunpack.c.l.b16 %v776
    %v786 = vunpack.c.l.b16 %v777
    %v787 = vunpack.c.l.b16 %v778
    %v788 = vunpack.c.l.b16 %v779
    %v789 = vpack.c.b16 %v786, %v785
    %v790 = vpack.c.b16 %v788, %v787
    %794 = vrot.lane.b32.xlu0 %v190, 64
    %v795 = vpop.permute.xlu0 %794
    %v798 = vsel %vm171, %v780, 0
    %800 = vmatprep.subr.bf16.mxu0 0
    %801 = vmatpush1.bf16.msra.mxu0 %v789
    %802 = vmatprep.subr.bf16.mxu0 0
    %803 = vmatpush1.bf16.msra.mxu0 %v790
    %804 = vmatprep.subr.bf16.mxu0 0
    %805 = vmatpush1.bf16.msra.mxu0 0
    %806 = vmatprep.subr.bf16.mxu0 0
    %807 = vmatpush1.bf16.msra.mxu0 0
    %808 = vmatprep.subr.bf16.mxu0 0
    %809 = vmatpush1.bf16.msra.mxu0 0
    %810 = vmatprep.subr.bf16.mxu0 0
    %811 = vmatpush1.bf16.msra.mxu0 0
    %812 = vmatprep.subr.bf16.mxu0 0
    %813 = vmatpush1.bf16.msra.mxu0 0
    %814 = vmatprep.subr.bf16.mxu0 0
    %815 = vmatpush1.bf16.msra.mxu0 0
    %816 = vmatprep.subr.bf16.mxu0 0
    %817 = vmatpush1.bf16.msra.mxu0 0
    %818 = vmatprep.subr.bf16.mxu0 0
    %819 = vmatpush1.bf16.msra.mxu0 0
    %820 = vmatprep.subr.bf16.mxu0 0
    %821 = vmatpush1.bf16.msra.mxu0 0
    %822 = vmatprep.subr.bf16.mxu0 0
    %823 = vmatpush1.bf16.msra.mxu0 0
    %824 = vmatprep.subr.bf16.mxu0 0
    %825 = vmatpush1.bf16.msra.mxu0 0
    %826 = vmatprep.subr.bf16.mxu0 0
    %827 = vmatpush1.bf16.msra.mxu0 0
    %828 = vmatprep.subr.bf16.mxu0 0
    %829 = vmatpush1.bf16.msra.mxu0 0
    %830 = vmatprep.subr.bf16.mxu0 0
    %831 = vmatpush1.bf16.msra.mxu0 0
    %832 = vmatprep.mubr.bf16.mxu0 0
    %833 = vmatmul.mubr.bf16.gmra.mrb[0].mxu0 %v798
    %v834 = vpop.f32.mrb[0].mxu0
    %v835 = vadd.f32 %v795, %v834
    %v836 = vpop.f32.mrb[0].mxu0
    %v837 = vpop.f32.mrb[0].mxu0
    %v838 = vadd.f32 %v795, %v837
    %v839 = vpop.f32.mrb[0].mxu0
    %840 = vdwg.mxu0
    %v841 = vadd.f32 %v153, %v835
    %v842 = vadd.f32 %v156, %v838
    %v843 = vmul.f32 %v841, %v841
    %v844 = vmul.f32 %v842, %v842
    %v845 = vsel %vm171, %v843, 0.0
    %846 = vadd.xlane.f32.xlu0 %v845
    %v847 = vpop.xlane.xlu0 %846
    %v848 = vsel %vm171, %v844, 0.0
    %849 = vadd.xlane.f32.xlu0 %v848
    %v850 = vpop.xlane.xlu0 %849
    %v851 = vmul.f32 %v847, %v178
    %v852 = vmul.f32 %v850, %v178
    %v853 = vadd.f32 %v851, 1e-05
    %v854 = vadd.f32 %v852, 1e-05
    %v855 = vrsqrt.pop %v853
    %v856 = vrsqrt.pop %v854
    %v857 = vmul.f32 %v841, %v855
    %v858 = vmul.f32 %v842, %v856
    %859 = vrot.lane.b32.xlu0 %v190, 96
    %v860 = vpop.permute.xlu0 %859
    %v862 = vmul.f32 %v857, %v860
    %v863 = vmul.f32 %v858, %v860
    %v864 = vpack.c.bf16 %v863, %v862
    %v865 = vld [vmem:[#allocation2 + $0x80] sm:$0xf]
    %v866 = vld [vmem:[#allocation2 + $0x84] sm:$0xf]
    %v867 = vld [vmem:[#allocation2 + $0x88] sm:$0xf]
    %v868 = vld [vmem:[#allocation2 + $0x8c] sm:$0xf]
    %v869 = vlaneseq
    %v870 = vshrl.u32 %v869, 7
    %v871 = vsub.s32 0, %v870
    %v872 = vrot.slane %v160, %v871
    %v877 = vunpack.c.l.b16 %v865
    %v878 = vunpack.c.l.b16 %v866
    %v879 = vunpack.c.l.b16 %v867
    %v880 = vunpack.c.l.b16 %v868
    %v881 = vpack.c.b16 %v878, %v877
    %v882 = vpack.c.b16 %v880, %v879
    %v886 = vsel %vm171, %v864, 0
    %888 = vmatprep.subr.bf16.mxu0 0
    %889 = vmatpush1.bf16.msra.mxu0 %v881
    %890 = vmatprep.subr.bf16.mxu0 0
    %891 = vmatpush1.bf16.msra.mxu0 %v882
    %892 = vmatprep.subr.bf16.mxu0 0
    %893 = vmatpush1.bf16.msra.mxu0 0
    %894 = vmatprep.subr.bf16.mxu0 0
    %895 = vmatpush1.bf16.msra.mxu0 0
    %896 = vmatprep.subr.bf16.mxu0 0
    %897 = vmatpush1.bf16.msra.mxu0 0
    %898 = vmatprep.subr.bf16.mxu0 0
    %899 = vmatpush1.bf16.msra.mxu0 0
    %900 = vmatprep.subr.bf16.mxu0 0
    %901 = vmatpush1.bf16.msra.mxu0 0
    %902 = vmatprep.subr.bf16.mxu0 0
    %903 = vmatpush1.bf16.msra.mxu0 0
    %904 = vmatprep.subr.bf16.mxu0 0
    %905 = vmatpush1.bf16.msra.mxu0 0
    %906 = vmatprep.subr.bf16.mxu0 0
    %907 = vmatpush1.bf16.msra.mxu0 0
    %908 = vmatprep.subr.bf16.mxu0 0
    %909 = vmatpush1.bf16.msra.mxu0 0
    %910 = vmatprep.subr.bf16.mxu0 0
    %911 = vmatpush1.bf16.msra.mxu0 0
    %912 = vmatprep.subr.bf16.mxu0 0
    %913 = vmatpush1.bf16.msra.mxu0 0
    %914 = vmatprep.subr.bf16.mxu0 0
    %915 = vmatpush1.bf16.msra.mxu0 0
    %916 = vmatprep.subr.bf16.mxu0 0
    %917 = vmatpush1.bf16.msra.mxu0 0
    %918 = vmatprep.subr.bf16.mxu0 0
    %919 = vmatpush1.bf16.msra.mxu0 0
    %920 = vmatprep.mubr.bf16.mxu0 0
    %921 = vmatmul.mubr.bf16.gmra.mrb[0].mxu0 %v886
    %v922 = vpop.f32.mrb[0].mxu0
    %v923 = vadd.f32 %v872, %v922
    %v924 = vpop.f32.mrb[0].mxu0
    %v925 = vpop.f32.mrb[0].mxu0
    %v926 = vadd.f32 %v872, %v925
    %v927 = vpop.f32.mrb[0].mxu0
    %928 = vdwg.mxu0
    %v929 = vmul.f32 %v923, %v923
    %v930 = vmul.f32 %v926, %v926
    %v931 = vmul.f32 %v923, %v929
    %v932 = vmul.f32 %v926, %v930
    %v933 = vmul.f32 %v931, 0.044715
    %v934 = vmul.f32 %v932, 0.044715
    %v935 = vadd.f32 %v923, %v933
    %v936 = vadd.f32 %v926, %v934
    %v937 = vmul.f32 %v935, 0.7978846
    %v938 = vmul.f32 %v936, 0.7978846
    %v939 = vtanh.pop %v937
    %v940 = vtanh.pop %v938
    %v941 = vadd.f32 %v939, 1.0
    %v942 = vadd.f32 %v940, 1.0
    %v943 = vmul.f32 %v941, 0.5
    %v944 = vmul.f32 %v942, 0.5
    %v945 = vmul.f32 %v923, %v943
    %v946 = vmul.f32 %v926, %v944
    %v947 = vld [vmem:[#allocation2 + $0x90] sm:$0xf]
    %v948 = vld [vmem:[#allocation2 + $0x94] sm:$0xf]
    %v949 = vld [vmem:[#allocation2 + $0x98] sm:$0xf]
    %v950 = vld [vmem:[#allocation2 + $0x9c] sm:$0xf]
    %v951 = vld [vmem:[#allocation2 + $0xa0] sm:$0xf]
    %v952 = vld [vmem:[#allocation2 + $0xa4] sm:$0xf]
    %v953 = vld [vmem:[#allocation2 + $0xa8] sm:$0xf]
    %v954 = vld [vmem:[#allocation2 + $0xac] sm:$0xf]
    %v955 = vld [vmem:[#allocation2 + $0xb0] sm:$0xf]
    %v956 = vld [vmem:[#allocation2 + $0xb4] sm:$0xf]
    %v957 = vld [vmem:[#allocation2 + $0xb8] sm:$0xf]
    %v958 = vld [vmem:[#allocation2 + $0xbc] sm:$0xf]
    %v959 = vld [vmem:[#allocation2 + $0xc0] sm:$0xf]
    %v960 = vld [vmem:[#allocation2 + $0xc4] sm:$0xf]
    %v961 = vld [vmem:[#allocation2 + $0xc8] sm:$0xf]
    %v962 = vld [vmem:[#allocation2 + $0xcc] sm:$0xf]
    %v963 = vpack.c.bf16 %v946, %v945
    %v980 = vunpack.c.l.b16 %v947
    %v981 = vunpack.c.l.b16 %v948
    %v982 = vunpack.c.l.b16 %v949
    %v983 = vunpack.c.l.b16 %v950
    %v984 = vunpack.c.l.b16 %v951
    %v985 = vunpack.c.l.b16 %v952
    %v986 = vunpack.c.l.b16 %v953
    %v987 = vunpack.c.l.b16 %v954
    %v988 = vunpack.c.l.b16 %v955
    %v989 = vunpack.c.l.b16 %v956
    %v990 = vunpack.c.l.b16 %v957
    %v991 = vunpack.c.l.b16 %v958
    %v992 = vunpack.c.l.b16 %v959
    %v993 = vunpack.c.l.b16 %v960
    %v994 = vunpack.c.l.b16 %v961
    %v995 = vunpack.c.l.b16 %v962
    %v996 = vpack.c.b16 %v981, %v980
    %v997 = vpack.c.b16 %v983, %v982
    %v998 = vpack.c.b16 %v985, %v984
    %v999 = vpack.c.b16 %v987, %v986
    %v1000 = vpack.c.b16 %v989, %v988
    %v1001 = vpack.c.b16 %v991, %v990
    %v1002 = vpack.c.b16 %v993, %v992
    %v1003 = vpack.c.b16 %v995, %v994
    %1012 = vrot.lane.b32.xlu0 %v190, 32
    %v1013 = vpop.permute.xlu0 %1012
    %1015 = vmatprep.subr.bf16.mxu0 0
    %1016 = vmatpush1.bf16.msra.mxu0 %v996
    %1017 = vmatprep.subr.bf16.mxu0 0
    %1018 = vmatpush1.bf16.msra.mxu0 %v997
    %1019 = vmatprep.subr.bf16.mxu0 0
    %1020 = vmatpush1.bf16.msra.mxu0 %v998
    %1021 = vmatprep.subr.bf16.mxu0 0
    %1022 = vmatpush1.bf16.msra.mxu0 %v999
    %1023 = vmatprep.subr.bf16.mxu0 0
    %1024 = vmatpush1.bf16.msra.mxu0 %v1000
    %1025 = vmatprep.subr.bf16.mxu0 0
    %1026 = vmatpush1.bf16.msra.mxu0 %v1001
    %1027 = vmatprep.subr.bf16.mxu0 0
    %1028 = vmatpush1.bf16.msra.mxu0 %v1002
    %1029 = vmatprep.subr.bf16.mxu0 0
    %1030 = vmatpush1.bf16.msra.mxu0 %v1003
    %1031 = vmatprep.subr.bf16.mxu0 0
    %1032 = vmatpush1.bf16.msra.mxu0 0
    %1033 = vmatprep.subr.bf16.mxu0 0
    %1034 = vmatpush1.bf16.msra.mxu0 0
    %1035 = vmatprep.subr.bf16.mxu0 0
    %1036 = vmatpush1.bf16.msra.mxu0 0
    %1037 = vmatprep.subr.bf16.mxu0 0
    %1038 = vmatpush1.bf16.msra.mxu0 0
    %1039 = vmatprep.subr.bf16.mxu0 0
    %1040 = vmatpush1.bf16.msra.mxu0 0
    %1041 = vmatprep.subr.bf16.mxu0 0
    %1042 = vmatpush1.bf16.msra.mxu0 0
    %1043 = vmatprep.subr.bf16.mxu0 0
    %1044 = vmatpush1.bf16.msra.mxu0 0
    %1045 = vmatprep.subr.bf16.mxu0 0
    %1046 = vmatpush1.bf16.msra.mxu0 0
    %1047 = vmatprep.mubr.bf16.mxu0 0
    %1048 = vmatmul.mubr.bf16.gmra.mrb[0].mxu0 %v963
    %v1049 = vpop.f32.mrb[0].mxu0
    %v1050 = vadd.f32 %v1013, %v1049
    %v1051 = vpop.f32.mrb[0].mxu0
    %v1052 = vpop.f32.mrb[0].mxu0
    %v1053 = vadd.f32 %v1013, %v1052
    %v1054 = vpop.f32.mrb[0].mxu0
    %1055 = vdwg.mxu0
    %v1056 = vadd.f32 %v841, %v1050
    %v1057 = vadd.f32 %v842, %v1053
    %v1058 = vld [vmem:[#allocation4 + $0x141] sm:$0x1]
    %v1059 = vld [vmem:[#allocation4 + $0x143] sm:$0x1]
    %v1060 = vld [vmem:[#allocation4 + $0x100] sm:$0xff]
    %v1061 = vld [vmem:[#allocation4 + $0x108] sm:$0xff]
    %v1062 = vld [vmem:[#allocation4 + $0x110] sm:$0xff]
    %v1063 = vld [vmem:[#allocation4 + $0x118] sm:$0xff]
    %v1064 = vld [vmem:[#allocation4 + $0x120] sm:$0xff]
    %v1065 = vld [vmem:[#allocation4 + $0x128] sm:$0xff]
    %v1066 = vld [vmem:[#allocation4 + $0x130] sm:$0xff]
    %v1067 = vld [vmem:[#allocation4 + $0x138] sm:$0xff]
    %v1068 = vmul.f32 %v1056, %v1056
    %v1069 = vmul.f32 %v1057, %v1057
    %v1070 = vsel %vm171, %v1068, 0.0
    %1071 = vadd.xlane.f32.xlu0 %v1070
    %v1072 = vpop.xlane.xlu0 %1071
    %v1073 = vsel %vm171, %v1069, 0.0
    %1074 = vadd.xlane.f32.xlu0 %v1073
    %v1075 = vpop.xlane.xlu0 %1074
    %v1076 = vmul.f32 %v1072, %v178
    %v1077 = vmul.f32 %v1075, %v178
    %v1078 = vadd.f32 %v1076, 1e-05
    %v1079 = vadd.f32 %v1077, 1e-05
    %v1080 = vrsqrt.pop %v1078
    %v1081 = vrsqrt.pop %v1079
    %v1082 = vmul.f32 %v1056, %v1080
    %v1083 = vmul.f32 %v1057, %v1081
    %v1084 = vlaneseq
    %v1085 = vshrl.u32 %v1084, 7
    %v1086 = vsub.s32 0, %v1085
    %v1087 = vrot.slane %v1058, %v1086
    %v1088 = vmul.f32 %v1082, %v1087
    %v1089 = vmul.f32 %v1083, %v1087
    %1092 = vrot.lane.b32.xlu0 %v1088, 32
    %v1093 = vpop.permute.xlu0 %1092
    %1094 = vrot.lane.b32.xlu0 %v1089, 32
    %v1095 = vpop.permute.xlu0 %1094
    %1098 = vrot.lane.b32.xlu0 %v1088, 64
    %v1099 = vpop.permute.xlu0 %1098
    %1100 = vrot.lane.b32.xlu0 %v1089, 64
    %v1101 = vpop.permute.xlu0 %1100
    %1104 = vrot.lane.b32.xlu0 %v1088, 96
    %v1105 = vpop.permute.xlu0 %1104
    %1106 = vrot.lane.b32.xlu0 %v1089, 96
    %v1107 = vpop.permute.xlu0 %1106
    %v1110 = vsel %vm171, %v1088, %v1093
    %v1111 = vsel %vm171, %v1089, %v1095
    %v1112 = vsel %vm114, %v1110, %v1099
    %v1113 = vsel %vm114, %v1111, %v1101
    %v1114 = vsel %vm217, %v1112, %v1105
    %v1115 = vsel %vm217, %v1113, %v1107
    %v1116 = vmul.f32 %v1114, %v59
    %v1117 = vmul.f32 %v1115, %v60
    %v1118 = vmul.f32 %v1114, %v61
    %v1119 = vmul.f32 %v1115, %v62
    %v1120 = vmul.f32 %v1114, %v63
    %v1121 = vmul.f32 %v1115, %v64
    %v1122 = vmul.f32 %v1114, %v65
    %v1123 = vmul.f32 %v1115, %v66
    %v1124 = vpack.c.bf16 %v1117, %v1116
    %v1125 = vpack.c.bf16 %v1119, %v1118
    %v1126 = vpack.c.bf16 %v1121, %v1120
    %v1127 = vpack.c.bf16 %v1123, %v1122
    %v1128 = vld [vmem:[#allocation2 + $0xd0] sm:$0xf]
    %v1129 = vld [vmem:[#allocation2 + $0xd4] sm:$0xf]
    %v1130 = vld [vmem:[#allocation2 + $0xd8] sm:$0xf]
    %v1131 = vld [vmem:[#allocation2 + $0xdc] sm:$0xf]
    %v1132 = vld [vmem:[#allocation2 + $0xe0] sm:$0xf]
    %v1133 = vld [vmem:[#allocation2 + $0xe4] sm:$0xf]
    %v1134 = vld [vmem:[#allocation2 + $0xe8] sm:$0xf]
    %v1135 = vld [vmem:[#allocation2 + $0xec] sm:$0xf]
    %v1136 = vld [vmem:[#allocation2 + $0xf0] sm:$0xf]
    %v1137 = vld [vmem:[#allocation2 + $0xf4] sm:$0xf]
    %v1138 = vld [vmem:[#allocation2 + $0xf8] sm:$0xf]
    %v1139 = vld [vmem:[#allocation2 + $0xfc] sm:$0xf]
    %v1140 = vld [vmem:[#allocation2 + $0x100] sm:$0xf]
    %v1141 = vld [vmem:[#allocation2 + $0x104] sm:$0xf]
    %v1142 = vld [vmem:[#allocation2 + $0x108] sm:$0xf]
    %v1143 = vld [vmem:[#allocation2 + $0x10c] sm:$0xf]
    %v1160 = vunpack.c.l.b16 %v1128
    %v1161 = vunpack.c.l.b16 %v1129
    %v1162 = vunpack.c.l.b16 %v1130
    %v1163 = vunpack.c.l.b16 %v1131
    %v1164 = vunpack.c.l.b16 %v1132
    %v1165 = vunpack.c.l.b16 %v1133
    %v1166 = vunpack.c.l.b16 %v1134
    %v1167 = vunpack.c.l.b16 %v1135
    %v1168 = vunpack.c.l.b16 %v1136
    %v1169 = vunpack.c.l.b16 %v1137
    %v1170 = vunpack.c.l.b16 %v1138
    %v1171 = vunpack.c.l.b16 %v1139
    %v1172 = vunpack.c.l.b16 %v1140
    %v1173 = vunpack.c.l.b16 %v1141
    %v1174 = vunpack.c.l.b16 %v1142
    %v1175 = vunpack.c.l.b16 %v1143
    %v1176 = vpack.c.b16 %v1161, %v1160
    %v1177 = vpack.c.b16 %v1163, %v1162
    %v1178 = vpack.c.b16 %v1165, %v1164
    %v1179 = vpack.c.b16 %v1167, %v1166
    %v1180 = vpack.c.b16 %v1169, %v1168
    %v1181 = vpack.c.b16 %v1171, %v1170
    %v1182 = vpack.c.b16 %v1173, %v1172
    %v1183 = vpack.c.b16 %v1175, %v1174
    %1192 = vmatprep.subr.bf16.mxu0 0
    %1193 = vmatpush1.bf16.msra.mxu0 %v1176
    %1194 = vmatprep.subr.bf16.mxu0 0
    %1195 = vmatpush1.bf16.msra.mxu0 %v1177
    %1196 = vmatprep.subr.bf16.mxu0 0
    %1197 = vmatpush1.bf16.msra.mxu0 %v1178
    %1198 = vmatprep.subr.bf16.mxu0 0
    %1199 = vmatpush1.bf16.msra.mxu0 %v1179
    %1200 = vmatprep.subr.bf16.mxu0 0
    %1201 = vmatpush1.bf16.msra.mxu0 %v1180
    %1202 = vmatprep.subr.bf16.mxu0 0
    %1203 = vmatpush1.bf16.msra.mxu0 %v1181
    %1204 = vmatprep.subr.bf16.mxu0 0
    %1205 = vmatpush1.bf16.msra.mxu0 %v1182
    %1206 = vmatprep.subr.bf16.mxu0 0
    %1207 = vmatpush1.bf16.msra.mxu0 %v1183
    %1208 = vmatprep.subr.bf16.mxu0 0
    %1209 = vmatpush1.bf16.msra.mxu0 0
    %1210 = vmatprep.subr.bf16.mxu0 0
    %1211 = vmatpush1.bf16.msra.mxu0 0
    %1212 = vmatprep.subr.bf16.mxu0 0
    %1213 = vmatpush1.bf16.msra.mxu0 0
    %1214 = vmatprep.subr.bf16.mxu0 0
    %1215 = vmatpush1.bf16.msra.mxu0 0
    %1216 = vmatprep.subr.bf16.mxu0 0
    %1217 = vmatpush1.bf16.msra.mxu0 0
    %1218 = vmatprep.subr.bf16.mxu0 0
    %1219 = vmatpush1.bf16.msra.mxu0 0
    %1220 = vmatprep.subr.bf16.mxu0 0
    %1221 = vmatpush1.bf16.msra.mxu0 0
    %1222 = vmatprep.subr.bf16.mxu0 0
    %1223 = vmatpush1.bf16.msra.mxu0 0
    %1224 = vmatprep.mubr.bf16.mxu0 0
    %1225 = vmatmul.mubr.bf16.gmra.mrb[0].mxu0 %v1124
    %v1226 = vpop.f32.mrb[0].mxu0
    %v1227 = vadd.f32 %v1060, %v1226
    %v1228 = vpop.f32.mrb[0].mxu0
    %v1229 = vpop.f32.mrb[0].mxu0
    %v1230 = vadd.f32 %v1061, %v1229
    %v1231 = vpop.f32.mrb[0].mxu0
    %1232 = vmatprep.mubr.bf16.mxu0 0
    %1233 = vmatmul.mubr.bf16.gmra.mrb[0].mxu0 %v1125
    %v1234 = vpop.f32.mrb[0].mxu0
    %v1235 = vadd.f32 %v1062, %v1234
    %v1236 = vpop.f32.mrb[0].mxu0
    %v1237 = vpop.f32.mrb[0].mxu0
    %v1238 = vadd.f32 %v1063, %v1237
    %v1239 = vpop.f32.mrb[0].mxu0
    %1240 = vmatprep.mubr.bf16.mxu0 0
    %1241 = vmatmul.mubr.bf16.gmra.mrb[0].mxu0 %v1126
    %v1242 = vpop.f32.mrb[0].mxu0
    %v1243 = vadd.f32 %v1064, %v1242
    %v1244 = vpop.f32.mrb[0].mxu0
    %v1245 = vpop.f32.mrb[0].mxu0
    %v1246 = vadd.f32 %v1065, %v1245
    %v1247 = vpop.f32.mrb[0].mxu0
    %1248 = vmatprep.mubr.bf16.mxu0 0
    %1249 = vmatmul.mubr.bf16.gmra.mrb[0].mxu0 %v1127
    %v1250 = vpop.f32.mrb[0].mxu0
    %v1251 = vadd.f32 %v1066, %v1250
    %v1252 = vpop.f32.mrb[0].mxu0
    %v1253 = vpop.f32.mrb[0].mxu0
    %v1254 = vadd.f32 %v1067, %v1253
    %v1255 = vpop.f32.mrb[0].mxu0
    %1256 = vdwg.mxu0
    %v1257 = vmul.f32 %v1227, %v51
    %v1258 = vmul.f32 %v1230, %v52
    %v1259 = vmul.f32 %v1235, %v53
    %v1260 = vmul.f32 %v1238, %v54
    %v1261 = vmul.f32 %v1243, %v55
    %v1262 = vmul.f32 %v1246, %v56
    %v1263 = vmul.f32 %v1251, %v57
    %v1264 = vmul.f32 %v1254, %v58
    %v1265 = vmul.f32 %v1227, %v378
    %v1266 = vmul.f32 %v1230, %v380
    %v1267 = vmul.f32 %v1235, %v382
    %v1268 = vmul.f32 %v1238, %v384
    %v1269 = vmul.f32 %v1243, %v386
    %v1270 = vmul.f32 %v1246, %v388
    %v1271 = vmul.f32 %v1251, %v390
    %v1272 = vmul.f32 %v1254, %v392
    %1281 = vrot.lane.b32.xlu0 %v1265, 104
    %v1282 = vpop.permute.xlu0 %1281
    %1283 = vrot.lane.b32.xlu0 %v1266, 104
    %v1284 = vpop.permute.xlu0 %1283
    %1285 = vrot.lane.b32.xlu0 %v1267, 104
    %v1286 = vpop.permute.xlu0 %1285
    %1287 = vrot.lane.b32.xlu0 %v1268, 104
    %v1288 = vpop.permute.xlu0 %1287
    %1289 = vrot.lane.b32.xlu0 %v1269, 104
    %v1290 = vpop.permute.xlu0 %1289
    %1291 = vrot.lane.b32.xlu0 %v1270, 104
    %v1292 = vpop.permute.xlu0 %1291
    %1293 = vrot.lane.b32.xlu0 %v1271, 104
    %v1294 = vpop.permute.xlu0 %1293
    %1295 = vrot.lane.b32.xlu0 %v1272, 104
    %v1296 = vpop.permute.xlu0 %1295
    %v1305 = vadd.f32 %v1257, %v1282
    %v1306 = vadd.f32 %v1258, %v1284
    %v1307 = vadd.f32 %v1259, %v1286
    %v1308 = vadd.f32 %v1260, %v1288
    %v1309 = vadd.f32 %v1261, %v1290
    %v1310 = vadd.f32 %v1262, %v1292
    %v1311 = vadd.f32 %v1263, %v1294
    %v1312 = vadd.f32 %v1264, %v1296
    %v1313 = vpack.c.bf16 %v1306, %v1305
    %v1314 = vpack.c.bf16 %v1308, %v1307
    %v1315 = vpack.c.bf16 %v1310, %v1309
    %v1316 = vpack.c.bf16 %v1312, %v1311
    %v1317 = vpack.c.bf16 %v1230, %v1227
    %v1318 = vpack.c.bf16 %v1238, %v1235
    %v1319 = vpack.c.bf16 %v1246, %v1243
    %v1320 = vpack.c.bf16 %v1254, %v1251
    %1325 = vrot.lane.b32.xlu0 %v1313, 120
    %v1326 = vpop.permute.xlu0 %1325
    %1327 = vrot.lane.b32.xlu0 %v1314, 120
    %v1328 = vpop.permute.xlu0 %1327
    %1329 = vrot.lane.b32.xlu0 %v1315, 120
    %v1330 = vpop.permute.xlu0 %1329
    %1331 = vrot.lane.b32.xlu0 %v1316, 120
    %v1332 = vpop.permute.xlu0 %1331
    %v1334 = vsel %vm469, %v1313, 0
    %v1337 = vsel %vm469, %v1314, 0
    %v1340 = vsel %vm469, %v1315, 0
    %v1343 = vsel %vm469, %v1316, 0
    %v1346 = vsel %vm469, %v1326, 0
    %v1349 = vsel %vm469, %v1328, 0
    %v1352 = vsel %vm469, %v1330, 0
    %v1355 = vsel %vm469, %v1332, 0
    %1357 = vmatprep.subr.bf16.mxu0 0
    %1358 = vmatpush1.bf16.xpose.msra.mxu0 %v1346
    %1359 = vmatprep.subr.bf16.mxu0 0
    %1360 = vmatpush1.bf16.xpose.msra.mxu0 %v1349
    %1361 = vmatprep.subr.bf16.mxu0 0
    %1362 = vmatpush1.bf16.xpose.msra.mxu0 %v1352
    %1363 = vmatprep.subr.bf16.mxu0 0
    %1364 = vmatpush1.bf16.xpose.msra.mxu0 %v1355
    %1365 = vmatprep.subr.bf16.mxu0 0
    %1366 = vmatpush1.bf16.xpose.msra.mxu0 0
    %1367 = vmatprep.subr.bf16.mxu0 0
    %1368 = vmatpush1.bf16.xpose.msra.mxu0 0
    %1369 = vmatprep.subr.bf16.mxu0 0
    %1370 = vmatpush1.bf16.xpose.msra.mxu0 0
    %1371 = vmatprep.subr.bf16.mxu0 0
    %1372 = vmatpush1.bf16.xpose.msra.mxu0 0
    %1373 = vmatprep.subr.bf16.mxu0 0
    %1374 = vmatpush1.bf16.xpose.msra.mxu0 0
    %1375 = vmatprep.subr.bf16.mxu0 0
    %1376 = vmatpush1.bf16.xpose.msra.mxu0 0
    %1377 = vmatprep.subr.bf16.mxu0 0
    %1378 = vmatpush1.bf16.xpose.msra.mxu0 0
    %1379 = vmatprep.subr.bf16.mxu0 0
    %1380 = vmatpush1.bf16.xpose.msra.mxu0 0
    %1381 = vmatprep.subr.bf16.mxu0 0
    %1382 = vmatpush1.bf16.xpose.msra.mxu0 0
    %1383 = vmatprep.subr.bf16.mxu0 0
    %1384 = vmatpush1.bf16.xpose.msra.mxu0 0
    %1385 = vmatprep.subr.bf16.mxu0 0
    %1386 = vmatpush1.bf16.xpose.msra.mxu0 0
    %1387 = vmatprep.subr.bf16.mxu0 0
    %1388 = vmatpush1.bf16.xpose.msra.mxu0 0
    %1389 = vmatprep.mubr.bf16.mxu0 0
    %1390 = vmatmul.mubr.bf16.gmra.mrb[0].mxu0 %v1334
    %v1391 = vpop.f32.mrb[0].mxu0
    %v1392 = vadd.f32 %v43, %v1391
    %v1393 = vpop.f32.mrb[0].mxu0
    %v1394 = vpop.f32.mrb[0].mxu0
    %v1395 = vadd.f32 %v44, %v1394
    %v1396 = vpop.f32.mrb[0].mxu0
    %1397 = vmatprep.mubr.bf16.mxu0 0
    %1398 = vmatmul.mubr.bf16.gmra.mrb[0].mxu0 %v1337
    %v1399 = vpop.f32.mrb[0].mxu0
    %v1400 = vadd.f32 %v45, %v1399
    %v1401 = vpop.f32.mrb[0].mxu0
    %v1402 = vpop.f32.mrb[0].mxu0
    %v1403 = vadd.f32 %v46, %v1402
    %v1404 = vpop.f32.mrb[0].mxu0
    %1405 = vmatprep.mubr.bf16.mxu0 0
    %1406 = vmatmul.mubr.bf16.gmra.mrb[0].mxu0 %v1340
    %v1407 = vpop.f32.mrb[0].mxu0
    %v1408 = vadd.f32 %v47, %v1407
    %v1409 = vpop.f32.mrb[0].mxu0
    %v1410 = vpop.f32.mrb[0].mxu0
    %v1411 = vadd.f32 %v48, %v1410
    %v1412 = vpop.f32.mrb[0].mxu0
    %1413 = vmatprep.mubr.bf16.mxu0 0
    %1414 = vmatmul.mubr.bf16.gmra.mrb[0].mxu0 %v1343
    %v1415 = vpop.f32.mrb[0].mxu0
    %v1416 = vadd.f32 %v49, %v1415
    %v1417 = vpop.f32.mrb[0].mxu0
    %v1418 = vpop.f32.mrb[0].mxu0
    %v1419 = vadd.f32 %v50, %v1418
    %v1420 = vpop.f32.mrb[0].mxu0
    %1421 = vdwg.mxu0
    %v1422 = vsel %vm114, %v1392, -inf
    %1423 = vmax.xlane.f32.xlu0 %v1422
    %v1424 = vpop.xlane.xlu0 %1423
    %v1425 = vsel %vm114, %v1395, -inf
    %1426 = vmax.xlane.f32.xlu0 %v1425
    %v1427 = vpop.xlane.xlu0 %1426
    %v1428 = vsel %vm114, %v1400, -inf
    %1429 = vmax.xlane.f32.xlu0 %v1428
    %v1430 = vpop.xlane.xlu0 %1429
    %v1431 = vsel %vm114, %v1403, -inf
    %1432 = vmax.xlane.f32.xlu0 %v1431
    %v1433 = vpop.xlane.xlu0 %1432
    %v1434 = vsel %vm114, %v1408, -inf
    %1435 = vmax.xlane.f32.xlu0 %v1434
    %v1436 = vpop.xlane.xlu0 %1435
    %v1437 = vsel %vm114, %v1411, -inf
    %1438 = vmax.xlane.f32.xlu0 %v1437
    %v1439 = vpop.xlane.xlu0 %1438
    %v1440 = vsel %vm114, %v1416, -inf
    %1441 = vmax.xlane.f32.xlu0 %v1440
    %v1442 = vpop.xlane.xlu0 %1441
    %v1443 = vsel %vm114, %v1419, -inf
    %1444 = vmax.xlane.f32.xlu0 %v1443
    %v1445 = vpop.xlane.xlu0 %1444
    %v1446 = vsub.f32 %v1392, %v1424
    %v1447 = vsub.f32 %v1395, %v1427
    %v1448 = vsub.f32 %v1400, %v1430
    %v1449 = vsub.f32 %v1403, %v1433
    %v1450 = vsub.f32 %v1408, %v1436
    %v1451 = vsub.f32 %v1411, %v1439
    %v1452 = vsub.f32 %v1416, %v1442
    %v1453 = vsub.f32 %v1419, %v1445
    %v1454 = vmul.f32 %v1446, 1.442695
    %v1455 = vpow.pop %v1454
    %v1456 = vmul.f32 %v1447, 1.442695
    %v1457 = vpow.pop %v1456
    %v1458 = vmul.f32 %v1448, 1.442695
    %v1459 = vpow.pop %v1458
    %v1460 = vmul.f32 %v1449, 1.442695
    %v1461 = vpow.pop %v1460
    %v1462 = vmul.f32 %v1450, 1.442695
    %v1463 = vpow.pop %v1462
    %v1464 = vmul.f32 %v1451, 1.442695
    %v1465 = vpow.pop %v1464
    %v1466 = vmul.f32 %v1452, 1.442695
    %v1467 = vpow.pop %v1466
    %v1468 = vmul.f32 %v1453, 1.442695
    %v1469 = vpow.pop %v1468
    %v1470 = vsel %vm114, %v1455, 0.0
    %1471 = vadd.xlane.f32.xlu0 %v1470
    %v1472 = vpop.xlane.xlu0 %1471
    %v1473 = vsel %vm114, %v1457, 0.0
    %1474 = vadd.xlane.f32.xlu0 %v1473
    %v1475 = vpop.xlane.xlu0 %1474
    %v1476 = vsel %vm114, %v1459, 0.0
    %1477 = vadd.xlane.f32.xlu0 %v1476
    %v1478 = vpop.xlane.xlu0 %1477
    %v1479 = vsel %vm114, %v1461, 0.0
    %1480 = vadd.xlane.f32.xlu0 %v1479
    %v1481 = vpop.xlane.xlu0 %1480
    %v1482 = vsel %vm114, %v1463, 0.0
    %1483 = vadd.xlane.f32.xlu0 %v1482
    %v1484 = vpop.xlane.xlu0 %1483
    %v1485 = vsel %vm114, %v1465, 0.0
    %1486 = vadd.xlane.f32.xlu0 %v1485
    %v1487 = vpop.xlane.xlu0 %1486
    %v1488 = vsel %vm114, %v1467, 0.0
    %1489 = vadd.xlane.f32.xlu0 %v1488
    %v1490 = vpop.xlane.xlu0 %1489
    %v1491 = vsel %vm114, %v1469, 0.0
    %1492 = vadd.xlane.f32.xlu0 %v1491
    %v1493 = vpop.xlane.xlu0 %1492
    %v1494 = vrcp.pop %v1472
    %v1495 = vrcp.pop %v1475
    %v1496 = vrcp.pop %v1478
    %v1497 = vrcp.pop %v1481
    %v1498 = vrcp.pop %v1484
    %v1499 = vrcp.pop %v1487
    %v1500 = vrcp.pop %v1490
    %v1501 = vrcp.pop %v1493
    %v1502 = vmul.f32 %v1455, %v1494
    %v1503 = vmul.f32 %v1457, %v1495
    %v1504 = vmul.f32 %v1459, %v1496
    %v1505 = vmul.f32 %v1461, %v1497
    %v1506 = vmul.f32 %v1463, %v1498
    %v1507 = vmul.f32 %v1465, %v1499
    %v1508 = vmul.f32 %v1467, %v1500
    %v1509 = vmul.f32 %v1469, %v1501
    %v1510 = vpack.c.bf16 %v1503, %v1502
    %v1511 = vpack.c.bf16 %v1505, %v1504
    %v1512 = vpack.c.bf16 %v1507, %v1506
    %v1513 = vpack.c.bf16 %v1509, %v1508
    %1518 = vrot.lane.b32.xlu0 %v1317, 112
    %v1519 = vpop.permute.xlu0 %1518
    %1520 = vrot.lane.b32.xlu0 %v1318, 112
    %v1521 = vpop.permute.xlu0 %1520
    %1522 = vrot.lane.b32.xlu0 %v1319, 112
    %v1523 = vpop.permute.xlu0 %1522
    %1524 = vrot.lane.b32.xlu0 %v1320, 112
    %v1525 = vpop.permute.xlu0 %1524
    %v1531 = vsel %vm114, %v1510, 0
    %v1534 = vsel %vm114, %v1511, 0
    %v1537 = vsel %vm114, %v1512, 0
    %v1540 = vsel %vm114, %v1513, 0
    %1542 = vmatprep.subr.bf16.mxu0 0
    %1543 = vmatpush1.bf16.msra.mxu0 %v1519
    %1544 = vmatprep.subr.bf16.mxu0 0
    %1545 = vmatpush1.bf16.msra.mxu0 %v1521
    %1546 = vmatprep.subr.bf16.mxu0 0
    %1547 = vmatpush1.bf16.msra.mxu0 %v1523
    %1548 = vmatprep.subr.bf16.mxu0 0
    %1549 = vmatpush1.bf16.msra.mxu0 %v1525
    %1550 = vmatprep.subr.bf16.mxu0 0
    %1551 = vmatpush1.bf16.msra.mxu0 0
    %1552 = vmatprep.subr.bf16.mxu0 0
    %1553 = vmatpush1.bf16.msra.mxu0 0
    %1554 = vmatprep.subr.bf16.mxu0 0
    %1555 = vmatpush1.bf16.msra.mxu0 0
    %1556 = vmatprep.subr.bf16.mxu0 0
    %1557 = vmatpush1.bf16.msra.mxu0 0
    %1558 = vmatprep.subr.bf16.mxu0 0
    %1559 = vmatpush1.bf16.msra.mxu0 0
    %1560 = vmatprep.subr.bf16.mxu0 0
    %1561 = vmatpush1.bf16.msra.mxu0 0
    %1562 = vmatprep.subr.bf16.mxu0 0
    %1563 = vmatpush1.bf16.msra.mxu0 0
    %1564 = vmatprep.subr.bf16.mxu0 0
    %1565 = vmatpush1.bf16.msra.mxu0 0
    %1566 = vmatprep.subr.bf16.mxu0 0
    %1567 = vmatpush1.bf16.msra.mxu0 0
    %1568 = vmatprep.subr.bf16.mxu0 0
    %1569 = vmatpush1.bf16.msra.mxu0 0
    %1570 = vmatprep.subr.bf16.mxu0 0
    %1571 = vmatpush1.bf16.msra.mxu0 0
    %1572 = vmatprep.subr.bf16.mxu0 0
    %1573 = vmatpush1.bf16.msra.mxu0 0
    %1574 = vmatprep.mubr.bf16.mxu0 0
    %1575 = vmatmul.mubr.bf16.gmra.mrb[0].mxu0 %v1531
    %v1576 = vpop.f32.mrb[0].mxu0
    %v1577 = vadd.f32 0.0, %v1576
    %v1578 = vpop.f32.mrb[0].mxu0
    %v1579 = vpop.f32.mrb[0].mxu0
    %v1580 = vadd.f32 0.0, %v1579
    %v1581 = vpop.f32.mrb[0].mxu0
    %1582 = vmatprep.mubr.bf16.mxu0 0
    %1583 = vmatmul.mubr.bf16.gmra.mrb[0].mxu0 %v1534
    %v1584 = vpop.f32.mrb[0].mxu0
    %v1585 = vadd.f32 0.0, %v1584
    %v1586 = vpop.f32.mrb[0].mxu0
    %v1587 = vpop.f32.mrb[0].mxu0
    %v1588 = vadd.f32 0.0, %v1587
    %v1589 = vpop.f32.mrb[0].mxu0
    %1590 = vmatprep.mubr.bf16.mxu0 0
    %1591 = vmatmul.mubr.bf16.gmra.mrb[0].mxu0 %v1537
    %v1592 = vpop.f32.mrb[0].mxu0
    %v1593 = vadd.f32 0.0, %v1592
    %v1594 = vpop.f32.mrb[0].mxu0
    %v1595 = vpop.f32.mrb[0].mxu0
    %v1596 = vadd.f32 0.0, %v1595
    %v1597 = vpop.f32.mrb[0].mxu0
    %1598 = vmatprep.mubr.bf16.mxu0 0
    %1599 = vmatmul.mubr.bf16.gmra.mrb[0].mxu0 %v1540
    %v1600 = vpop.f32.mrb[0].mxu0
    %v1601 = vadd.f32 0.0, %v1600
    %v1602 = vpop.f32.mrb[0].mxu0
    %v1603 = vpop.f32.mrb[0].mxu0
    %v1604 = vadd.f32 0.0, %v1603
    %v1605 = vpop.f32.mrb[0].mxu0
    %1606 = vdwg.mxu0
    %1609 = vrot.lane.b32.xlu0 %v1585, 8
    %v1610 = vpop.permute.xlu0 %1609
    %1611 = vrot.lane.b32.xlu0 %v1588, 8
    %v1612 = vpop.permute.xlu0 %1611
    %1617 = vrot.lane.b32.xlu0 %v1593, 16
    %v1618 = vpop.permute.xlu0 %1617
    %1619 = vrot.lane.b32.xlu0 %v1596, 16
    %v1620 = vpop.permute.xlu0 %1619
    %1625 = vrot.lane.b32.xlu0 %v1601, 24
    %v1626 = vpop.permute.xlu0 %1625
    %1627 = vrot.lane.b32.xlu0 %v1604, 24
    %v1628 = vpop.permute.xlu0 %1627
    %v1631 = vsel %vm469, %v1577, %v1610
    %v1632 = vsel %vm469, %v1580, %v1612
    %v1633 = vsel %vm770, %v1631, %v1618
    %v1634 = vsel %vm770, %v1632, %v1620
    %v1635 = vsel %vm773, %v1633, %v1626
    %v1636 = vsel %vm773, %v1634, %v1628
    %v1637 = vld [vmem:[#allocation2 + $0x110] sm:$0xf]
    %v1638 = vld [vmem:[#allocation2 + $0x114] sm:$0xf]
    %v1639 = vld [vmem:[#allocation2 + $0x118] sm:$0xf]
    %v1640 = vld [vmem:[#allocation2 + $0x11c] sm:$0xf]
    %v1641 = vpack.c.bf16 %v1636, %v1635
    %v1646 = vunpack.c.l.b16 %v1637
    %v1647 = vunpack.c.l.b16 %v1638
    %v1648 = vunpack.c.l.b16 %v1639
    %v1649 = vunpack.c.l.b16 %v1640
    %v1650 = vpack.c.b16 %v1647, %v1646
    %v1651 = vpack.c.b16 %v1649, %v1648
    %1655 = vrot.lane.b32.xlu0 %v1087, 64
    %v1656 = vpop.permute.xlu0 %1655
    %v1659 = vsel %vm171, %v1641, 0
    %1661 = vmatprep.subr.bf16.mxu0 0
    %1662 = vmatpush1.bf16.msra.mxu0 %v1650
    %1663 = vmatprep.subr.bf16.mxu0 0
    %1664 = vmatpush1.bf16.msra.mxu0 %v1651
    %1665 = vmatprep.subr.bf16.mxu0 0
    %1666 = vmatpush1.bf16.msra.mxu0 0
    %1667 = vmatprep.subr.bf16.mxu0 0
    %1668 = vmatpush1.bf16.msra.mxu0 0
    %1669 = vmatprep.subr.bf16.mxu0 0
    %1670 = vmatpush1.bf16.msra.mxu0 0
    %1671 = vmatprep.subr.bf16.mxu0 0
    %1672 = vmatpush1.bf16.msra.mxu0 0
    %1673 = vmatprep.subr.bf16.mxu0 0
    %1674 = vmatpush1.bf16.msra.mxu0 0
    %1675 = vmatprep.subr.bf16.mxu0 0
    %1676 = vmatpush1.bf16.msra.mxu0 0
    %1677 = vmatprep.subr.bf16.mxu0 0
    %1678 = vmatpush1.bf16.msra.mxu0 0
    %1679 = vmatprep.subr.bf16.mxu0 0
    %1680 = vmatpush1.bf16.msra.mxu0 0
    %1681 = vmatprep.subr.bf16.mxu0 0
    %1682 = vmatpush1.bf16.msra.mxu0 0
    %1683 = vmatprep.subr.bf16.mxu0 0
    %1684 = vmatpush1.bf16.msra.mxu0 0
    %1685 = vmatprep.subr.bf16.mxu0 0
    %1686 = vmatpush1.bf16.msra.mxu0 0
    %1687 = vmatprep.subr.bf16.mxu0 0
    %1688 = vmatpush1.bf16.msra.mxu0 0
    %1689 = vmatprep.subr.bf16.mxu0 0
    %1690 = vmatpush1.bf16.msra.mxu0 0
    %1691 = vmatprep.subr.bf16.mxu0 0
    %1692 = vmatpush1.bf16.msra.mxu0 0
    %1693 = vmatprep.mubr.bf16.mxu0 0
    %1694 = vmatmul.mubr.bf16.gmra.mrb[0].mxu0 %v1659
    %v1695 = vpop.f32.mrb[0].mxu0
    %v1696 = vadd.f32 %v1656, %v1695
    %v1697 = vpop.f32.mrb[0].mxu0
    %v1698 = vpop.f32.mrb[0].mxu0
    %v1699 = vadd.f32 %v1656, %v1698
    %v1700 = vpop.f32.mrb[0].mxu0
    %1701 = vdwg.mxu0
    %v1702 = vadd.f32 %v1056, %v1696
    %v1703 = vadd.f32 %v1057, %v1699
    %v1704 = vmul.f32 %v1702, %v1702
    %v1705 = vmul.f32 %v1703, %v1703
    %v1706 = vsel %vm171, %v1704, 0.0
    %1707 = vadd.xlane.f32.xlu0 %v1706
    %v1708 = vpop.xlane.xlu0 %1707
    %v1709 = vsel %vm171, %v1705, 0.0
    %1710 = vadd.xlane.f32.xlu0 %v1709
    %v1711 = vpop.xlane.xlu0 %1710
    %v1712 = vmul.f32 %v1708, %v178
    %v1713 = vmul.f32 %v1711, %v178
    %v1714 = vadd.f32 %v1712, 1e-05
    %v1715 = vadd.f32 %v1713, 1e-05
    %v1716 = vrsqrt.pop %v1714
    %v1717 = vrsqrt.pop %v1715
    %v1718 = vmul.f32 %v1702, %v1716
    %v1719 = vmul.f32 %v1703, %v1717
    %1720 = vrot.lane.b32.xlu0 %v1087, 96
    %v1721 = vpop.permute.xlu0 %1720
    %v1723 = vmul.f32 %v1718, %v1721
    %v1724 = vmul.f32 %v1719, %v1721
    %v1725 = vpack.c.bf16 %v1724, %v1723
    %v1726 = vld [vmem:[#allocation2 + $0x120] sm:$0xf]
    %v1727 = vld [vmem:[#allocation2 + $0x124] sm:$0xf]
    %v1728 = vld [vmem:[#allocation2 + $0x128] sm:$0xf]
    %v1729 = vld [vmem:[#allocation2 + $0x12c] sm:$0xf]
    %v1730 = vlaneseq
    %v1731 = vshrl.u32 %v1730, 7
    %v1732 = vsub.s32 0, %v1731
    %v1733 = vrot.slane %v1059, %v1732
    %v1738 = vunpack.c.l.b16 %v1726
    %v1739 = vunpack.c.l.b16 %v1727
    %v1740 = vunpack.c.l.b16 %v1728
    %v1741 = vunpack.c.l.b16 %v1729
    %v1742 = vpack.c.b16 %v1739, %v1738
    %v1743 = vpack.c.b16 %v1741, %v1740
    %v1747 = vsel %vm171, %v1725, 0
    %1749 = vmatprep.subr.bf16.mxu0 0
    %1750 = vmatpush1.bf16.msra.mxu0 %v1742
    %1751 = vmatprep.subr.bf16.mxu0 0
    %1752 = vmatpush1.bf16.msra.mxu0 %v1743
    %1753 = vmatprep.subr.bf16.mxu0 0
    %1754 = vmatpush1.bf16.msra.mxu0 0
    %1755 = vmatprep.subr.bf16.mxu0 0
    %1756 = vmatpush1.bf16.msra.mxu0 0
    %1757 = vmatprep.subr.bf16.mxu0 0
    %1758 = vmatpush1.bf16.msra.mxu0 0
    %1759 = vmatprep.subr.bf16.mxu0 0
    %1760 = vmatpush1.bf16.msra.mxu0 0
    %1761 = vmatprep.subr.bf16.mxu0 0
    %1762 = vmatpush1.bf16.msra.mxu0 0
    %1763 = vmatprep.subr.bf16.mxu0 0
    %1764 = vmatpush1.bf16.msra.mxu0 0
    %1765 = vmatprep.subr.bf16.mxu0 0
    %1766 = vmatpush1.bf16.msra.mxu0 0
    %1767 = vmatprep.subr.bf16.mxu0 0
    %1768 = vmatpush1.bf16.msra.mxu0 0
    %1769 = vmatprep.subr.bf16.mxu0 0
    %1770 = vmatpush1.bf16.msra.mxu0 0
    %1771 = vmatprep.subr.bf16.mxu0 0
    %1772 = vmatpush1.bf16.msra.mxu0 0
    %1773 = vmatprep.subr.bf16.mxu0 0
    %1774 = vmatpush1.bf16.msra.mxu0 0
    %1775 = vmatprep.subr.bf16.mxu0 0
    %1776 = vmatpush1.bf16.msra.mxu0 0
    %1777 = vmatprep.subr.bf16.mxu0 0
    %1778 = vmatpush1.bf16.msra.mxu0 0
    %1779 = vmatprep.subr.bf16.mxu0 0
    %1780 = vmatpush1.bf16.msra.mxu0 0
    %1781 = vmatprep.mubr.bf16.mxu0 0
    %1782 = vmatmul.mubr.bf16.gmra.mrb[0].mxu0 %v1747
    %v1783 = vpop.f32.mrb[0].mxu0
    %v1784 = vadd.f32 %v1733, %v1783
    %v1785 = vpop.f32.mrb[0].mxu0
    %v1786 = vpop.f32.mrb[0].mxu0
    %v1787 = vadd.f32 %v1733, %v1786
    %v1788 = vpop.f32.mrb[0].mxu0
    %1789 = vdwg.mxu0
    %v1790 = vmul.f32 %v1784, %v1784
    %v1791 = vmul.f32 %v1787, %v1787
    %v1792 = vmul.f32 %v1784, %v1790
    %v1793 = vmul.f32 %v1787, %v1791
    %v1794 = vmul.f32 %v1792, 0.044715
    %v1795 = vmul.f32 %v1793, 0.044715
    %v1796 = vadd.f32 %v1784, %v1794
    %v1797 = vadd.f32 %v1787, %v1795
    %v1798 = vmul.f32 %v1796, 0.7978846
    %v1799 = vmul.f32 %v1797, 0.7978846
    %v1800 = vtanh.pop %v1798
    %v1801 = vtanh.pop %v1799
    %v1802 = vadd.f32 %v1800, 1.0
    %v1803 = vadd.f32 %v1801, 1.0
    %v1804 = vmul.f32 %v1802, 0.5
    %v1805 = vmul.f32 %v1803, 0.5
    %v1806 = vmul.f32 %v1784, %v1804
    %v1807 = vmul.f32 %v1787, %v1805
    %v1808 = vld [vmem:[#allocation2 + $0x130] sm:$0xf]
    %v1809 = vld [vmem:[#allocation2 + $0x134] sm:$0xf]
    %v1810 = vld [vmem:[#allocation2 + $0x138] sm:$0xf]
    %v1811 = vld [vmem:[#allocation2 + $0x13c] sm:$0xf]
    %v1812 = vld [vmem:[#allocation2 + $0x140] sm:$0xf]
    %v1813 = vld [vmem:[#allocation2 + $0x144] sm:$0xf]
    %v1814 = vld [vmem:[#allocation2 + $0x148] sm:$0xf]
    %v1815 = vld [vmem:[#allocation2 + $0x14c] sm:$0xf]
    %v1816 = vld [vmem:[#allocation2 + $0x150] sm:$0xf]
    %v1817 = vld [vmem:[#allocation2 + $0x154] sm:$0xf]
    %v1818 = vld [vmem:[#allocation2 + $0x158] sm:$0xf]
    %v1819 = vld [vmem:[#allocation2 + $0x15c] sm:$0xf]
    %v1820 = vld [vmem:[#allocation2 + $0x160] sm:$0xf]
    %v1821 = vld [vmem:[#allocation2 + $0x164] sm:$0xf]
    %v1822 = vld [vmem:[#allocation2 + $0x168] sm:$0xf]
    %v1823 = vld [vmem:[#allocation2 + $0x16c] sm:$0xf]
    %v1824 = vpack.c.bf16 %v1807, %v1806
    %v1841 = vunpack.c.l.b16 %v1808
    %v1842 = vunpack.c.l.b16 %v1809
    %v1843 = vunpack.c.l.b16 %v1810
    %v1844 = vunpack.c.l.b16 %v1811
    %v1845 = vunpack.c.l.b16 %v1812
    %v1846 = vunpack.c.l.b16 %v1813
    %v1847 = vunpack.c.l.b16 %v1814
    %v1848 = vunpack.c.l.b16 %v1815
    %v1849 = vunpack.c.l.b16 %v1816
    %v1850 = vunpack.c.l.b16 %v1817
    %v1851 = vunpack.c.l.b16 %v1818
    %v1852 = vunpack.c.l.b16 %v1819
    %v1853 = vunpack.c.l.b16 %v1820
    %v1854 = vunpack.c.l.b16 %v1821
    %v1855 = vunpack.c.l.b16 %v1822
    %v1856 = vunpack.c.l.b16 %v1823
    %v1857 = vpack.c.b16 %v1842, %v1841
    %v1858 = vpack.c.b16 %v1844, %v1843
    %v1859 = vpack.c.b16 %v1846, %v1845
    %v1860 = vpack.c.b16 %v1848, %v1847
    %v1861 = vpack.c.b16 %v1850, %v1849
    %v1862 = vpack.c.b16 %v1852, %v1851
    %v1863 = vpack.c.b16 %v1854, %v1853
    %v1864 = vpack.c.b16 %v1856, %v1855
    %1873 = vrot.lane.b32.xlu0 %v1087, 32
    %v1874 = vpop.permute.xlu0 %1873
    %1876 = vmatprep.subr.bf16.mxu0 0
    %1877 = vmatpush1.bf16.msra.mxu0 %v1857
    %1878 = vmatprep.subr.bf16.mxu0 0
    %1879 = vmatpush1.bf16.msra.mxu0 %v1858
    %1880 = vmatprep.subr.bf16.mxu0 0
    %1881 = vmatpush1.bf16.msra.mxu0 %v1859
    %1882 = vmatprep.subr.bf16.mxu0 0
    %1883 = vmatpush1.bf16.msra.mxu0 %v1860
    %1884 = vmatprep.subr.bf16.mxu0 0
    %1885 = vmatpush1.bf16.msra.mxu0 %v1861
    %1886 = vmatprep.subr.bf16.mxu0 0
    %1887 = vmatpush1.bf16.msra.mxu0 %v1862
    %1888 = vmatprep.subr.bf16.mxu0 0
    %1889 = vmatpush1.bf16.msra.mxu0 %v1863
    %1890 = vmatprep.subr.bf16.mxu0 0
    %1891 = vmatpush1.bf16.msra.mxu0 %v1864
    %1892 = vmatprep.subr.bf16.mxu0 0
    %1893 = vmatpush1.bf16.msra.mxu0 0
    %1894 = vmatprep.subr.bf16.mxu0 0
    %1895 = vmatpush1.bf16.msra.mxu0 0
    %1896 = vmatprep.subr.bf16.mxu0 0
    %1897 = vmatpush1.bf16.msra.mxu0 0
    %1898 = vmatprep.subr.bf16.mxu0 0
    %1899 = vmatpush1.bf16.msra.mxu0 0
    %1900 = vmatprep.subr.bf16.mxu0 0
    %1901 = vmatpush1.bf16.msra.mxu0 0
    %1902 = vmatprep.subr.bf16.mxu0 0
    %1903 = vmatpush1.bf16.msra.mxu0 0
    %1904 = vmatprep.subr.bf16.mxu0 0
    %1905 = vmatpush1.bf16.msra.mxu0 0
    %1906 = vmatprep.subr.bf16.mxu0 0
    %1907 = vmatpush1.bf16.msra.mxu0 0
    %1908 = vmatprep.mubr.bf16.mxu0 0
    %1909 = vmatmul.mubr.bf16.gmra.mrb[0].mxu0 %v1824
    %v1910 = vpop.f32.mrb[0].mxu0
    %v1911 = vadd.f32 %v1874, %v1910
    %v1912 = vpop.f32.mrb[0].mxu0
    %v1913 = vpop.f32.mrb[0].mxu0
    %v1914 = vadd.f32 %v1874, %v1913
    %v1915 = vpop.f32.mrb[0].mxu0
    %1916 = vdwg.mxu0
    %v1917 = vadd.f32 %v1702, %v1911
    %v1918 = vadd.f32 %v1703, %v1914
    %v1919 = vld [vmem:[#allocation4 + $0x144] sm:$0x1]
    %v1920 = vmul.f32 %v1917, %v1917
    %v1921 = vmul.f32 %v1918, %v1918
    %v1922 = vsel %vm171, %v1920, 0.0
    %1923 = vadd.xlane.f32.xlu0 %v1922
    %v1924 = vpop.xlane.xlu0 %1923
    %v1925 = vsel %vm171, %v1921, 0.0
    %1926 = vadd.xlane.f32.xlu0 %v1925
    %v1927 = vpop.xlane.xlu0 %1926
    %v1928 = vmul.f32 %v1924, %v178
    %v1929 = vmul.f32 %v1927, %v178
    %v1930 = vadd.f32 %v1928, 1e-05
    %v1931 = vadd.f32 %v1929, 1e-05
    %v1932 = vrsqrt.pop %v1930
    %v1933 = vrsqrt.pop %v1931
    %v1934 = vmul.f32 %v1917, %v1932
    %v1935 = vmul.f32 %v1918, %v1933
    %v1936 = vlaneseq
    %v1937 = vshrl.u32 %v1936, 7
    %v1938 = vsub.s32 0, %v1937
    %v1939 = vrot.slane %v1919, %v1938
    %v1940 = vmul.f32 %v1934, %v1939
    %v1941 = vmul.f32 %v1935, %v1939
    %v1942 = vpack.c.bf16 %v1941, %v1940
    %v1943 = vld [vmem:[#allocation2 + $0x20] sm:$0xf]
    %v1944 = vld [vmem:[#allocation2 + $0x24] sm:$0xf]
    %v1945 = vld [vmem:[#allocation2 + $0x28] sm:$0xf]
    %v1946 = vld [vmem:[#allocation2 + $0x2c] sm:$0xf]
    %v1947 = vld [vmem:[#allocation4 + $0x145] sm:$0x1]
    %v1948 = vlaneseq
    %v1949 = vshrl.u32 %v1948, 7
    %v1950 = vsub.s32 0, %v1949
    %v1951 = vrot.slane %v1947, %v1950
    %v1956 = vunpack.c.l.b16 %v1943
    %v1957 = vunpack.c.l.b16 %v1944
    %v1958 = vunpack.c.l.b16 %v1945
    %v1959 = vunpack.c.l.b16 %v1946
    %v1960 = vpack.c.b16 %v1957, %v1956
    %v1961 = vpack.c.b16 %v1959, %v1958
    %v1965 = vsel %vm171, %v1942, 0
    %1967 = vmatprep.subr.bf16.mxu0 0
    %1968 = vmatpush1.bf16.msra.mxu0 %v1960
    %1969 = vmatprep.subr.bf16.mxu0 0
    %1970 = vmatpush1.bf16.msra.mxu0 %v1961
    %1971 = vmatprep.subr.bf16.mxu0 0
    %1972 = vmatpush1.bf16.msra.mxu0 0
    %1973 = vmatprep.subr.bf16.mxu0 0
    %1974 = vmatpush1.bf16.msra.mxu0 0
    %1975 = vmatprep.subr.bf16.mxu0 0
    %1976 = vmatpush1.bf16.msra.mxu0 0
    %1977 = vmatprep.subr.bf16.mxu0 0
    %1978 = vmatpush1.bf16.msra.mxu0 0
    %1979 = vmatprep.subr.bf16.mxu0 0
    %1980 = vmatpush1.bf16.msra.mxu0 0
    %1981 = vmatprep.subr.bf16.mxu0 0
    %1982 = vmatpush1.bf16.msra.mxu0 0
    %1983 = vmatprep.subr.bf16.mxu0 0
    %1984 = vmatpush1.bf16.msra.mxu0 0
    %1985 = vmatprep.subr.bf16.mxu0 0
    %1986 = vmatpush1.bf16.msra.mxu0 0
    %1987 = vmatprep.subr.bf16.mxu0 0
    %1988 = vmatpush1.bf16.msra.mxu0 0
    %1989 = vmatprep.subr.bf16.mxu0 0
    %1990 = vmatpush1.bf16.msra.mxu0 0
    %1991 = vmatprep.subr.bf16.mxu0 0
    %1992 = vmatpush1.bf16.msra.mxu0 0
    %1993 = vmatprep.subr.bf16.mxu0 0
    %1994 = vmatpush1.bf16.msra.mxu0 0
    %1995 = vmatprep.subr.bf16.mxu0 0
    %1996 = vmatpush1.bf16.msra.mxu0 0
    %1997 = vmatprep.subr.bf16.mxu0 0
    %1998 = vmatpush1.bf16.msra.mxu0 0
    %1999 = vmatprep.mubr.bf16.mxu0 0
    %2000 = vmatmul.mubr.bf16.gmra.mrb[0].mxu0 %v1965
    %v2001 = vpop.f32.mrb[0].mxu0
    %v2002 = vadd.f32 %v1951, %v2001
    %v2003 = vpop.f32.mrb[0].mxu0
    %v2004 = vpop.f32.mrb[0].mxu0
    %v2005 = vadd.f32 %v1951, %v2004
    %v2006 = vpop.f32.mrb[0].mxu0
    %2007 = vdwg.mxu0
    %2008 = vst [vmem:[%s3] sm:$0xff] %v2002
    %2009 = vst [vmem:[%s3 + $0x8] sm:$0xff] %v2005
    // Predicated region
    $region22: #{tiny_gpt_forward.1} parent=1 // pred_check
      _
    $region23: #{tiny_gpt_forward.1} parent=1 // pred_check_branch
      %2011 = sbr.rel (0) target = $region25
    $region24: #{tiny_gpt_forward.1} parent=1 // pred_region
      _
    $region25: #{tiny_gpt_forward.1} parent=1 // pred_fallthru
      _
    // Predicated region
    $region26: #{tiny_gpt_forward.1} parent=1 // pred_check
      _
    $region27: #{tiny_gpt_forward.1} parent=1 // pred_check_branch
      %2013 = sbr.rel (0) target = $region29
    $region28: #{tiny_gpt_forward.1} parent=1 // pred_region
      _
    $region29: #{tiny_gpt_forward.1} parent=1 // pred_fallthru
      _
    %2014 = vsyncpa [#allocation3], 1
    %2015 = vsyncpa [#allocation5], 1

</llo_original>
